<compile_context>
chip_gen: v5e
topology: v5e:2x2
jax: 0.10.0
libtpu: 0.0.40
codegen_flags: <defaults>
</compile_context>

<pallas_src>
import functools

import jax
import jax.numpy as jnp
from jax.experimental import pallas as pl
from jax.experimental.pallas import tpu as pltpu


# ----------------------------------------------------------------------------
# In-kernel helpers (traced inside the Pallas kernel)
# ----------------------------------------------------------------------------
def _layer_norm(h, gamma, beta, eps=1e-5):
    mean = jnp.mean(h, axis=-1, keepdims=True)
    var = jnp.mean((h - mean) * (h - mean), axis=-1, keepdims=True)
    return (h - mean) * jax.lax.rsqrt(var + eps) * gamma + beta


def _dot_nt(a, b):
    """a @ b.T without materializing a transpose (contract last dims)."""
    return jax.lax.dot_general(
        a, b, (((1,), (1,)), ((), ())), preferred_element_type=jnp.float32)


def _cl_loss(za, zb, temperature):
    """mean((CE(logits, targets) + CE(logits.T, targets.T)) / 2)  -> (1,1).

    logits  = za @ zb.T / T
    targets = softmax((za@za.T + zb@zb.T) / 2 * T, axis=-1)
    The transposed CE term is computed as an axis-0 log-softmax of `logits`
    (no transposed copies needed); the two terms collapse to a single
    elementwise product and full reduction.
    """
    logits = _dot_nt(za, zb) * (1.0 / temperature)
    sim_a = _dot_nt(za, za)
    sim_b = _dot_nt(zb, zb)

    t_logits = (sim_a + sim_b) * (0.5 * temperature)
    t_max = jnp.max(t_logits, axis=-1, keepdims=True)
    t_exp = jnp.exp(t_logits - t_max)
    targets = t_exp * pl.reciprocal(
        jnp.sum(t_exp, axis=-1, keepdims=True), approx=True)

    # row log-softmax
    m_r = jnp.max(logits, axis=-1, keepdims=True)
    s_r = logits - m_r
    ls_row = s_r - jnp.log(jnp.sum(jnp.exp(s_r), axis=-1, keepdims=True))
    # log-softmax of logits.T expressed on logits (axis 0)
    m_c = jnp.max(logits, axis=0, keepdims=True)
    s_c = logits - m_c
    ls_col = s_c - jnp.log(jnp.sum(jnp.exp(s_c), axis=0, keepdims=True))

    b = za.shape[0]
    total = jnp.sum(-targets * (ls_row + ls_col), axis=(0, 1), keepdims=True)
    return total * (1.0 / (2.0 * b))


# ----------------------------------------------------------------------------
# Single fused forward kernel
# ----------------------------------------------------------------------------
def _fused_forward_kernel(
    # image branch
    img_ref, img_w_ref, img_b_ref,
    iw1_ref, ib1_ref, iw2_ref, ib2_ref, ig_ref, ibt_ref,
    # node branches (pruned branch = first half of feature axis, non-pruned = second)
    feat_ref, adj_ref, fp_w_ref, fp_b_ref,
    g_w1_ref, g_b1_ref, g_w2_ref, g_b2_ref,
    p_w1_ref, p_b1_ref, p_w2_ref, p_b2_ref, p_g_ref, p_bt_ref,
    entity_ref,
    # outputs
    loss_ref, node_embed_prune_ref, node_embed_ref,
    *, temperature):
    f32 = jnp.float32

    # ---- image encoder (flatten + Linear stand-in; bf16 MXU path) + projection head
    img = img_ref[...].astype(jnp.bfloat16)
    img_feat = (jnp.dot(img, img_w_ref[...], preferred_element_type=f32)
                + img_b_ref[...])
    # TODO(synk): PyTorch nn.GELU() is erf-exact; tanh approximation used here.
    projected = (jnp.dot(img_feat, iw1_ref[...], preferred_element_type=f32)
                 + ib1_ref[...])
    h = jax.nn.gelu(projected, approximate=True)
    h = jnp.dot(h, iw2_ref[...], preferred_element_type=f32) + ib2_ref[...]
    h = h + projected                               # dropout is identity (eval)
    image_embeddings = _layer_norm(h, ig_ref[...], ibt_ref[...])

    # ---- both node branches with one set of wide (64-lane) matmuls
    feat = feat_ref[...]
    adj = adj_ref[...]
    h0 = jnp.dot(feat, fp_w_ref[...], preferred_element_type=f32) + fp_b_ref[...]
    h1 = jnp.dot(h0, g_w1_ref[...], preferred_element_type=f32) + g_b1_ref[...]
    h1 = jnp.dot(adj, h1, preferred_element_type=f32)
    h1 = jnp.maximum(h1, 0.0)
    h1 = jnp.dot(h1, g_w2_ref[...], preferred_element_type=f32) + g_b2_ref[...]
    node_embed_cat = jnp.dot(adj, h1, preferred_element_type=f32)      # (N, 2D)

    D = node_embed_prune_ref.shape[-1]
    node_embed_prune_ref[...] = node_embed_cat[:, :D]
    node_embed_ref[...] = node_embed_cat[:, D:]

    # batched projection heads (block-diagonal weights), LayerNorm per half
    projected = (jnp.dot(node_embed_cat, p_w1_ref[...], preferred_element_type=f32)
                 + p_b1_ref[...])
    hp = jax.nn.gelu(projected, approximate=True)
    hp = jnp.dot(hp, p_w2_ref[...], preferred_element_type=f32) + p_b2_ref[...]
    hp = hp + projected                                                # (N, 2P)
    P = hp.shape[-1] // 2
    gamma = p_g_ref[...]
    beta = p_bt_ref[...]
    proj_prune = _layer_norm(hp[:, :P], gamma[:, :P], beta[:, :P])
    proj_full = _layer_norm(hp[:, P:], gamma[:, P:], beta[:, P:])

    # ---- entity gather in-kernel via one-hot matmul (all VMEM resident)
    B = img_ref.shape[0]
    N = adj_ref.shape[0]
    col_ids = jax.lax.broadcasted_iota(jnp.int32, (B, N), 1)
    sel = (col_ids == entity_ref[...]).astype(f32)                     # (B, N)
    node_batch_prune = jnp.dot(sel, proj_prune, preferred_element_type=f32)
    node_batch = jnp.dot(sel, proj_full, preferred_element_type=f32)

    # ---- fused symmetric contrastive losses
    loss_inter = _cl_loss(node_batch_prune, image_embeddings, temperature)
    loss_intra = _cl_loss(node_batch, node_batch_prune, temperature)
    loss_ref[...] = loss_inter + loss_intra


# ----------------------------------------------------------------------------
# pallas_call wrapper (single fused launch, grid=(1,), full-array blocks)
# ----------------------------------------------------------------------------
def _fb(shape):
    return pl.BlockSpec(shape, lambda i: tuple(0 for _ in shape))


def node_image_cl_forward(params, image, feature, adj, entity, pos, temperature):
    del pos  # TODO(synk): args.pos assumed False; sparse-pos branch not exercised.
    B = image.shape[0]
    N = feature.shape[0]
    D = params["gcn_b1"].shape[1] // 2

    img_flat = image.reshape(B, -1)                    # glue: NCHW -> [B, C*H*W]
    entity2d = entity.astype(jnp.int32).reshape(B, 1)  # glue: gather ids -> VMEM

    kernel = functools.partial(_fused_forward_kernel,
                               temperature=float(temperature))

    in_arrays = (
        img_flat, params["img_enc_w"], params["img_enc_b"],
        params["img_ph_w1"], params["img_ph_b1"], params["img_ph_w2"],
        params["img_ph_b2"], params["img_ph_g"], params["img_ph_beta"],
        feature, adj, params["fp_w"], params["fp_b"],
        params["gcn_w1"], params["gcn_b1"], params["gcn_w2"], params["gcn_b2"],
        params["ph_w1"], params["ph_b1"], params["ph_w2"], params["ph_b2"],
        params["ph_g"], params["ph_beta"],
        entity2d,
    )
    in_specs = [_fb(a.shape) for a in in_arrays]

    out_shape = (
        jax.ShapeDtypeStruct((1, 1), jnp.float32),     # loss
        jax.ShapeDtypeStruct((N, D), jnp.float32),     # node_embed_prune
        jax.ShapeDtypeStruct((N, D), jnp.float32),     # node_embed
    )
    out_specs = (_fb((1, 1)), _fb((N, D)), _fb((N, D)))

    loss, node_embed_prune, node_embed = pl.pallas_call(
        kernel,
        grid=(1,),
        in_specs=in_specs,
        out_specs=out_specs,
        out_shape=out_shape,
        compiler_params=pltpu.CompilerParams(
            dimension_semantics=("arbitrary",)),
    )(*in_arrays)
    return loss[0, 0], node_embed_prune, node_embed


# ----------------------------------------------------------------------------
# Parameters (deterministic synthetic init; both node branches packed at init)
# ----------------------------------------------------------------------------
def _dense_init(key, din, dout, scale=0.05):
    kw, kb = jax.random.split(key)
    w = scale * jax.random.normal(kw, (din, dout), jnp.float32)
    b = scale * jax.random.normal(kb, (1, dout), jnp.float32)
    return w, b


def _proj_head_init(key, din, dproj):
    k1, k2 = jax.random.split(key)
    w1, b1 = _dense_init(k1, din, dproj)
    w2, b2 = _dense_init(k2, dproj, dproj)
    return {"w1": w1, "b1": b1, "w2": w2, "b2": b2,
            "gamma": jnp.ones((1, dproj), jnp.float32),
            "beta": jnp.zeros((1, dproj), jnp.float32)}


def _gcn_init(key, din, dhid, dout):
    k1, k2 = jax.random.split(key)
    w1, b1 = _dense_init(k1, din, dhid)
    w2, b2 = _dense_init(k2, dhid, dout)
    return {"w1": w1, "b1": b1, "w2": w2, "b2": b2}


def _block_diag(a, b):
    top = jnp.concatenate([a, jnp.zeros((a.shape[0], b.shape[1]), a.dtype)], axis=1)
    bot = jnp.concatenate([jnp.zeros((b.shape[0], a.shape[1]), b.dtype), b], axis=1)
    return jnp.concatenate([top, bot], axis=0)


def init_params(key, *, img_flat_dim, feat_dim, image_embedding_dim,
                node_embedding_dim, projection_dim):
    ks = jax.random.split(key, 8)
    # TODO(synk): real ImageEncoder is a pretrained CNN backbone + transforms;
    # synthetic stand-in = flatten + Linear to image_embedding_dim (bf16 weight).
    img_w, img_b = _dense_init(ks[0], img_flat_dim, image_embedding_dim)
    img_ph = _proj_head_init(ks[1], image_embedding_dim, projection_dim)

    # pruned branch: feature_projection -> node_encoder_prune -> node_embed_prune_projection
    fp_p_w, fp_p_b = _dense_init(ks[2], feat_dim, node_embedding_dim)
    gcn_p = _gcn_init(ks[3], node_embedding_dim, node_embedding_dim,
                      node_embedding_dim)
    ph_p = _proj_head_init(ks[4], node_embedding_dim, projection_dim)

    # non-pruned branch: feature_projection_prune -> node_encoder -> node_embed_projection
    fp_n_w, fp_n_b = _dense_init(ks[5], feat_dim, node_embedding_dim)
    gcn_n = _gcn_init(ks[6], node_embedding_dim, node_embedding_dim,
                      node_embedding_dim)
    ph_n = _proj_head_init(ks[7], node_embedding_dim, projection_dim)

    # Pack both node branches: concat along output axis / block-diagonal weights
    # (pruned branch occupies the first half of the packed feature axis).
    return {
        "img_enc_w": img_w.astype(jnp.bfloat16),
        "img_enc_b": img_b,
        "img_ph_w1": img_ph["w1"], "img_ph_b1": img_ph["b1"],
        "img_ph_w2": img_ph["w2"], "img_ph_b2": img_ph["b2"],
        "img_ph_g": img_ph["gamma"], "img_ph_beta": img_ph["beta"],
        "fp_w": jnp.concatenate([fp_p_w, fp_n_w], axis=1),
        "fp_b": jnp.concatenate([fp_p_b, fp_n_b], axis=1),
        "gcn_w1": _block_diag(gcn_p["w1"], gcn_n["w1"]),
        "gcn_b1": jnp.concatenate([gcn_p["b1"], gcn_n["b1"]], axis=1),
        "gcn_w2": _block_diag(gcn_p["w2"], gcn_n["w2"]),
        "gcn_b2": jnp.concatenate([gcn_p["b2"], gcn_n["b2"]], axis=1),
        "ph_w1": _block_diag(ph_p["w1"], ph_n["w1"]),
        "ph_b1": jnp.concatenate([ph_p["b1"], ph_n["b1"]], axis=1),
        "ph_w2": _block_diag(ph_p["w2"], ph_n["w2"]),
        "ph_b2": jnp.concatenate([ph_p["b2"], ph_n["b2"]], axis=1),
        "ph_g": jnp.concatenate([ph_p["gamma"], ph_n["gamma"]], axis=1),
        "ph_beta": jnp.concatenate([ph_p["beta"], ph_n["beta"]], axis=1),
    }


# ----------------------------------------------------------------------------
if __name__ == "__main__":
    B, C, H, W = 8, 3, 16, 16
    N_NODES, FEAT_DIM = 16, 32
    IMAGE_EMBEDDING_DIM = 32
    NODE_EMBEDDING_DIM = 32
    PROJECTION_DIM = 32
    TEMPERATURE = 1.0

    root = jax.random.PRNGKey(0)
    kp, k_img, k_feat, k_adj, k_ent, k_pos = jax.random.split(root, 6)

    params = init_params(kp,
                         img_flat_dim=C * H * W,
                         feat_dim=FEAT_DIM,
                         image_embedding_dim=IMAGE_EMBEDDING_DIM,
                         node_embedding_dim=NODE_EMBEDDING_DIM,
                         projection_dim=PROJECTION_DIM)

    image = jax.random.normal(k_img, (B, C, H, W), jnp.float32)       # NCHW
    feature = jax.random.normal(k_feat, (N_NODES, FEAT_DIM), jnp.float32)

    adj = (jax.random.uniform(k_adj, (N_NODES, N_NODES)) > 0.6).astype(jnp.float32)
    adj = jnp.minimum(adj + adj.T + jnp.eye(N_NODES, dtype=jnp.float32), 1.0)
    adj = adj / jnp.sum(adj, axis=1, keepdims=True)                   # row-normalized

    entity = jax.random.permutation(k_ent, N_NODES)[:B]               # batch['entity']
    pos = (jax.random.uniform(k_pos, (N_NODES, N_NODES)) > 0.7).astype(jnp.float32)

    loss, node_embed_prune, node_embed = node_image_cl_forward(
        params, image, feature, adj, entity, pos, TEMPERATURE)
    jax.block_until_ready((loss, node_embed_prune, node_embed))

    assert node_embed_prune.shape == (N_NODES, NODE_EMBEDDING_DIM)
    assert node_embed.shape == (N_NODES, NODE_EMBEDDING_DIM)
    assert bool(jnp.isfinite(loss))
    print("KERNEL_OK")
</pallas_src>

<mosaic_0001>
module attributes {stable_mosaic.version = 11 : i64} {
  func.func @_fused_forward_kernel(%arg0: i32, %arg1: memref<8x768xf32, #tpu.memory_space<vmem>>, %arg2: memref<768x32xbf16, #tpu.memory_space<vmem>>, %arg3: memref<1x32xf32, #tpu.memory_space<vmem>>, %arg4: memref<32x32xf32, #tpu.memory_space<vmem>>, %arg5: memref<1x32xf32, #tpu.memory_space<vmem>>, %arg6: memref<32x32xf32, #tpu.memory_space<vmem>>, %arg7: memref<1x32xf32, #tpu.memory_space<vmem>>, %arg8: memref<1x32xf32, #tpu.memory_space<vmem>>, %arg9: memref<1x32xf32, #tpu.memory_space<vmem>>, %arg10: memref<16x32xf32, #tpu.memory_space<vmem>>, %arg11: memref<16x16xf32, #tpu.memory_space<vmem>>, %arg12: memref<32x64xf32, #tpu.memory_space<vmem>>, %arg13: memref<1x64xf32, #tpu.memory_space<vmem>>, %arg14: memref<64x64xf32, #tpu.memory_space<vmem>>, %arg15: memref<1x64xf32, #tpu.memory_space<vmem>>, %arg16: memref<64x64xf32, #tpu.memory_space<vmem>>, %arg17: memref<1x64xf32, #tpu.memory_space<vmem>>, %arg18: memref<64x64xf32, #tpu.memory_space<vmem>>, %arg19: memref<1x64xf32, #tpu.memory_space<vmem>>, %arg20: memref<64x64xf32, #tpu.memory_space<vmem>>, %arg21: memref<1x64xf32, #tpu.memory_space<vmem>>, %arg22: memref<1x64xf32, #tpu.memory_space<vmem>>, %arg23: memref<1x64xf32, #tpu.memory_space<vmem>>, %arg24: memref<8x1xi32, #tpu.memory_space<vmem>>, %arg25: memref<1x1xf32, #tpu.memory_space<vmem>>, %arg26: memref<16x32xf32, #tpu.memory_space<vmem>>, %arg27: memref<16x32xf32, #tpu.memory_space<vmem>>) attributes {dimension_semantics = [#tpu.dimension_semantics<arbitrary>], iteration_bounds = array<i64: 1>, scalar_prefetch = 0 : i64, scratch_operands = 0 : i64, tpu.core_type = #tpu.core_type<tc>, window_params = [{pipeline_mode = #tpu.pipeline_mode<synchronous>, transform_indices = @transform_0, window_bounds = array<i64: 8, 768>}, {pipeline_mode = #tpu.pipeline_mode<synchronous>, transform_indices = @transform_1, window_bounds = array<i64: 768, 32>}, {pipeline_mode = #tpu.pipeline_mode<synchronous>, transform_indices = @transform_2, window_bounds = array<i64: 1, 32>}, {pipeline_mode = #tpu.pipeline_mode<synchronous>, transform_indices = @transform_3, window_bounds = array<i64: 32, 32>}, {pipeline_mode = #tpu.pipeline_mode<synchronous>, transform_indices = @transform_4, window_bounds = array<i64: 1, 32>}, {pipeline_mode = #tpu.pipeline_mode<synchronous>, transform_indices = @transform_5, window_bounds = array<i64: 32, 32>}, {pipeline_mode = #tpu.pipeline_mode<synchronous>, transform_indices = @transform_6, window_bounds = array<i64: 1, 32>}, {pipeline_mode = #tpu.pipeline_mode<synchronous>, transform_indices = @transform_7, window_bounds = array<i64: 1, 32>}, {pipeline_mode = #tpu.pipeline_mode<synchronous>, transform_indices = @transform_8, window_bounds = array<i64: 1, 32>}, {pipeline_mode = #tpu.pipeline_mode<synchronous>, transform_indices = @transform_9, window_bounds = array<i64: 16, 32>}, {pipeline_mode = #tpu.pipeline_mode<synchronous>, transform_indices = @transform_10, window_bounds = array<i64: 16, 16>}, {pipeline_mode = #tpu.pipeline_mode<synchronous>, transform_indices = @transform_11, window_bounds = array<i64: 32, 64>}, {pipeline_mode = #tpu.pipeline_mode<synchronous>, transform_indices = @transform_12, window_bounds = array<i64: 1, 64>}, {pipeline_mode = #tpu.pipeline_mode<synchronous>, transform_indices = @transform_13, window_bounds = array<i64: 64, 64>}, {pipeline_mode = #tpu.pipeline_mode<synchronous>, transform_indices = @transform_14, window_bounds = array<i64: 1, 64>}, {pipeline_mode = #tpu.pipeline_mode<synchronous>, transform_indices = @transform_15, window_bounds = array<i64: 64, 64>}, {pipeline_mode = #tpu.pipeline_mode<synchronous>, transform_indices = @transform_16, window_bounds = array<i64: 1, 64>}, {pipeline_mode = #tpu.pipeline_mode<synchronous>, transform_indices = @transform_17, window_bounds = array<i64: 64, 64>}, {pipeline_mode = #tpu.pipeline_mode<synchronous>, transform_indices = @transform_18, window_bounds = array<i64: 1, 64>}, {pipeline_mode = #tpu.pipeline_mode<synchronous>, transform_indices = @transform_19, window_bounds = array<i64: 64, 64>}, {pipeline_mode = #tpu.pipeline_mode<synchronous>, transform_indices = @transform_20, window_bounds = array<i64: 1, 64>}, {pipeline_mode = #tpu.pipeline_mode<synchronous>, transform_indices = @transform_21, window_bounds = array<i64: 1, 64>}, {pipeline_mode = #tpu.pipeline_mode<synchronous>, transform_indices = @transform_22, window_bounds = array<i64: 1, 64>}, {pipeline_mode = #tpu.pipeline_mode<synchronous>, transform_indices = @transform_23, window_bounds = array<i64: 8, 1>}, {pipeline_mode = #tpu.pipeline_mode<synchronous>, transform_indices = @transform_24, window_bounds = array<i64: 1, 1>}, {pipeline_mode = #tpu.pipeline_mode<synchronous>, transform_indices = @transform_25, window_bounds = array<i64: 16, 32>}, {pipeline_mode = #tpu.pipeline_mode<synchronous>, transform_indices = @transform_26, window_bounds = array<i64: 16, 32>}]} {
    %c0 = arith.constant 0 : index
    %c0_0 = arith.constant 0 : index
    %0 = vector.load %arg1[%c0, %c0_0] : memref<8x768xf32, #tpu.memory_space<vmem>>, vector<8x768xf32>
    %1 = arith.truncf %0 : vector<8x768xf32> to vector<8x768xbf16>
    %c0_1 = arith.constant 0 : index
    %c0_2 = arith.constant 0 : index
    %2 = vector.load %arg2[%c0_1, %c0_2] : memref<768x32xbf16, #tpu.memory_space<vmem>>, vector<768x32xbf16>
    %cst = arith.constant dense<0.000000e+00> : vector<8x32xf32>
    %3 = tpu.matmul %1, %2, %cst {dimension_numbers = #tpu.dot_dimension_numbers<[1], [0], [0], [1], [0, 0, 1, 1], [], []>} : vector<8x768xbf16>, vector<768x32xbf16>, vector<8x32xf32> -> vector<8x32xf32>
    %c0_3 = arith.constant 0 : index
    %c0_4 = arith.constant 0 : index
    %4 = vector.load %arg3[%c0_3, %c0_4] : memref<1x32xf32, #tpu.memory_space<vmem>>, vector<1x32xf32>
    %5 = vector.broadcast %4 : vector<1x32xf32> to vector<8x32xf32>
    %6 = arith.addf %3, %5 : vector<8x32xf32>
    %c0_5 = arith.constant 0 : index
    %c0_6 = arith.constant 0 : index
    %7 = vector.load %arg4[%c0_5, %c0_6] : memref<32x32xf32, #tpu.memory_space<vmem>>, vector<32x32xf32>
    %cst_7 = arith.constant dense<0.000000e+00> : vector<8x32xf32>
    %8 = tpu.matmul %6, %7, %cst_7 {dimension_numbers = #tpu.dot_dimension_numbers<[1], [0], [0], [1], [0, 0, 1, 1], [], []>} : vector<8x32xf32>, vector<32x32xf32>, vector<8x32xf32> -> vector<8x32xf32>
    %c0_8 = arith.constant 0 : index
    %c0_9 = arith.constant 0 : index
    %9 = vector.load %arg5[%c0_8, %c0_9] : memref<1x32xf32, #tpu.memory_space<vmem>>, vector<1x32xf32>
    %10 = vector.broadcast %9 : vector<1x32xf32> to vector<8x32xf32>
    %11 = arith.addf %8, %10 : vector<8x32xf32>
    %12 = arith.mulf %11, %11 : vector<8x32xf32>
    %13 = arith.mulf %11, %12 : vector<8x32xf32>
    %cst_10 = arith.constant 4.471500e-02 : f32
    %14 = vector.broadcast %cst_10 : f32 to vector<8x32xf32>
    %15 = arith.mulf %14, %13 : vector<8x32xf32>
    %16 = arith.addf %11, %15 : vector<8x32xf32>
    %cst_11 = arith.constant 0.797884583 : f32
    %17 = vector.broadcast %cst_11 : f32 to vector<8x32xf32>
    %18 = arith.mulf %17, %16 : vector<8x32xf32>
    %19 = math.tanh %18 : vector<8x32xf32>
    %cst_12 = arith.constant 1.000000e+00 : f32
    %20 = vector.broadcast %cst_12 : f32 to vector<8x32xf32>
    %21 = arith.addf %20, %19 : vector<8x32xf32>
    %cst_13 = arith.constant 5.000000e-01 : f32
    %22 = vector.broadcast %cst_13 : f32 to vector<8x32xf32>
    %23 = arith.mulf %22, %21 : vector<8x32xf32>
    %24 = arith.mulf %11, %23 : vector<8x32xf32>
    %c0_14 = arith.constant 0 : index
    %c0_15 = arith.constant 0 : index
    %25 = vector.load %arg6[%c0_14, %c0_15] : memref<32x32xf32, #tpu.memory_space<vmem>>, vector<32x32xf32>
    %cst_16 = arith.constant dense<0.000000e+00> : vector<8x32xf32>
    %26 = tpu.matmul %24, %25, %cst_16 {dimension_numbers = #tpu.dot_dimension_numbers<[1], [0], [0], [1], [0, 0, 1, 1], [], []>} : vector<8x32xf32>, vector<32x32xf32>, vector<8x32xf32> -> vector<8x32xf32>
    %c0_17 = arith.constant 0 : index
    %c0_18 = arith.constant 0 : index
    %27 = vector.load %arg7[%c0_17, %c0_18] : memref<1x32xf32, #tpu.memory_space<vmem>>, vector<1x32xf32>
    %28 = vector.broadcast %27 : vector<1x32xf32> to vector<8x32xf32>
    %29 = arith.addf %26, %28 : vector<8x32xf32>
    %30 = arith.addf %29, %11 : vector<8x32xf32>
    %c0_19 = arith.constant 0 : index
    %c0_20 = arith.constant 0 : index
    %31 = vector.load %arg8[%c0_19, %c0_20] : memref<1x32xf32, #tpu.memory_space<vmem>>, vector<1x32xf32>
    %c0_21 = arith.constant 0 : index
    %c0_22 = arith.constant 0 : index
    %32 = vector.load %arg9[%c0_21, %c0_22] : memref<1x32xf32, #tpu.memory_space<vmem>>, vector<1x32xf32>
    %cst_23 = arith.constant dense<0.000000e+00> : vector<8xf32>
    %33 = vector.multi_reduction <add>, %30, %cst_23 [1] : vector<8x32xf32> to vector<8xf32>
    %34 = vector.shape_cast %33 : vector<8xf32> to vector<8x1xf32>
    %cst_24 = arith.constant 3.200000e+01 : f32
    %35 = vector.broadcast %cst_24 : f32 to vector<8x1xf32>
    %36 = arith.divf %34, %35 : vector<8x1xf32>
    %37 = vector.broadcast %36 : vector<8x1xf32> to vector<8x32xf32>
    %38 = arith.subf %30, %37 : vector<8x32xf32>
    %39 = vector.broadcast %36 : vector<8x1xf32> to vector<8x32xf32>
    %40 = arith.subf %30, %39 : vector<8x32xf32>
    %41 = arith.mulf %38, %40 : vector<8x32xf32>
    %cst_25 = arith.constant dense<0.000000e+00> : vector<8xf32>
    %42 = vector.multi_reduction <add>, %41, %cst_25 [1] : vector<8x32xf32> to vector<8xf32>
    %43 = vector.shape_cast %42 : vector<8xf32> to vector<8x1xf32>
    %cst_26 = arith.constant 3.200000e+01 : f32
    %44 = vector.broadcast %cst_26 : f32 to vector<8x1xf32>
    %45 = arith.divf %43, %44 : vector<8x1xf32>
    %46 = vector.broadcast %36 : vector<8x1xf32> to vector<8x32xf32>
    %47 = arith.subf %30, %46 : vector<8x32xf32>
    %cst_27 = arith.constant 9.99999974E-6 : f32
    %48 = vector.broadcast %cst_27 : f32 to vector<8x1xf32>
    %49 = arith.addf %45, %48 : vector<8x1xf32>
    %50 = math.rsqrt %49 : vector<8x1xf32>
    %51 = vector.broadcast %50 : vector<8x1xf32> to vector<8x32xf32>
    %52 = arith.mulf %47, %51 : vector<8x32xf32>
    %53 = vector.broadcast %31 : vector<1x32xf32> to vector<8x32xf32>
    %54 = arith.mulf %52, %53 : vector<8x32xf32>
    %55 = vector.broadcast %32 : vector<1x32xf32> to vector<8x32xf32>
    %56 = arith.addf %54, %55 : vector<8x32xf32>
    %c0_28 = arith.constant 0 : index
    %c0_29 = arith.constant 0 : index
    %57 = vector.load %arg10[%c0_28, %c0_29] : memref<16x32xf32, #tpu.memory_space<vmem>>, vector<16x32xf32>
    %c0_30 = arith.constant 0 : index
    %c0_31 = arith.constant 0 : index
    %58 = vector.load %arg11[%c0_30, %c0_31] : memref<16x16xf32, #tpu.memory_space<vmem>>, vector<16x16xf32>
    %c0_32 = arith.constant 0 : index
    %c0_33 = arith.constant 0 : index
    %59 = vector.load %arg12[%c0_32, %c0_33] : memref<32x64xf32, #tpu.memory_space<vmem>>, vector<32x64xf32>
    %cst_34 = arith.constant dense<0.000000e+00> : vector<16x64xf32>
    %60 = tpu.matmul %57, %59, %cst_34 {dimension_numbers = #tpu.dot_dimension_numbers<[1], [0], [0], [1], [0, 0, 1, 1], [], []>} : vector<16x32xf32>, vector<32x64xf32>, vector<16x64xf32> -> vector<16x64xf32>
    %c0_35 = arith.constant 0 : index
    %c0_36 = arith.constant 0 : index
    %61 = vector.load %arg13[%c0_35, %c0_36] : memref<1x64xf32, #tpu.memory_space<vmem>>, vector<1x64xf32>
    %62 = vector.broadcast %61 : vector<1x64xf32> to vector<16x64xf32>
    %63 = arith.addf %60, %62 : vector<16x64xf32>
    %c0_37 = arith.constant 0 : index
    %c0_38 = arith.constant 0 : index
    %64 = vector.load %arg14[%c0_37, %c0_38] : memref<64x64xf32, #tpu.memory_space<vmem>>, vector<64x64xf32>
    %cst_39 = arith.constant dense<0.000000e+00> : vector<16x64xf32>
    %65 = tpu.matmul %63, %64, %cst_39 {dimension_numbers = #tpu.dot_dimension_numbers<[1], [0], [0], [1], [0, 0, 1, 1], [], []>} : vector<16x64xf32>, vector<64x64xf32>, vector<16x64xf32> -> vector<16x64xf32>
    %c0_40 = arith.constant 0 : index
    %c0_41 = arith.constant 0 : index
    %66 = vector.load %arg15[%c0_40, %c0_41] : memref<1x64xf32, #tpu.memory_space<vmem>>, vector<1x64xf32>
    %67 = vector.broadcast %66 : vector<1x64xf32> to vector<16x64xf32>
    %68 = arith.addf %65, %67 : vector<16x64xf32>
    %cst_42 = arith.constant dense<0.000000e+00> : vector<16x64xf32>
    %69 = tpu.matmul %58, %68, %cst_42 {dimension_numbers = #tpu.dot_dimension_numbers<[1], [0], [0], [1], [0, 0, 1, 1], [], []>} : vector<16x16xf32>, vector<16x64xf32>, vector<16x64xf32> -> vector<16x64xf32>
    %cst_43 = arith.constant 0.000000e+00 : f32
    %70 = vector.broadcast %cst_43 : f32 to vector<16x64xf32>
    %71 = arith.maximumf %69, %70 : vector<16x64xf32>
    %c0_44 = arith.constant 0 : index
    %c0_45 = arith.constant 0 : index
    %72 = vector.load %arg16[%c0_44, %c0_45] : memref<64x64xf32, #tpu.memory_space<vmem>>, vector<64x64xf32>
    %cst_46 = arith.constant dense<0.000000e+00> : vector<16x64xf32>
    %73 = tpu.matmul %71, %72, %cst_46 {dimension_numbers = #tpu.dot_dimension_numbers<[1], [0], [0], [1], [0, 0, 1, 1], [], []>} : vector<16x64xf32>, vector<64x64xf32>, vector<16x64xf32> -> vector<16x64xf32>
    %c0_47 = arith.constant 0 : index
    %c0_48 = arith.constant 0 : index
    %74 = vector.load %arg17[%c0_47, %c0_48] : memref<1x64xf32, #tpu.memory_space<vmem>>, vector<1x64xf32>
    %75 = vector.broadcast %74 : vector<1x64xf32> to vector<16x64xf32>
    %76 = arith.addf %73, %75 : vector<16x64xf32>
    %cst_49 = arith.constant dense<0.000000e+00> : vector<16x64xf32>
    %77 = tpu.matmul %58, %76, %cst_49 {dimension_numbers = #tpu.dot_dimension_numbers<[1], [0], [0], [1], [0, 0, 1, 1], [], []>} : vector<16x16xf32>, vector<16x64xf32>, vector<16x64xf32> -> vector<16x64xf32>
    %78 = vector.extract_strided_slice %77 {offsets = [0, 0], sizes = [16, 32], strides = [1, 1]} : vector<16x64xf32> to vector<16x32xf32>
    %c0_50 = arith.constant 0 : index
    %c0_51 = arith.constant 0 : index
    %79 = vector.load %arg26[%c0_50, %c0_51] : memref<16x32xf32, #tpu.memory_space<vmem>>, vector<16x32xf32>
    tpu.vector_store %arg26[%c0_50, %c0_51], %78 {strides = array<i32>} : memref<16x32xf32, #tpu.memory_space<vmem>>, vector<16x32xf32>,
    %80 = vector.extract_strided_slice %77 {offsets = [0, 32], sizes = [16, 32], strides = [1, 1]} : vector<16x64xf32> to vector<16x32xf32>
    %c0_52 = arith.constant 0 : index
    %c0_53 = arith.constant 0 : index
    %81 = vector.load %arg27[%c0_52, %c0_53] : memref<16x32xf32, #tpu.memory_space<vmem>>, vector<16x32xf32>
    tpu.vector_store %arg27[%c0_52, %c0_53], %80 {strides = array<i32>} : memref<16x32xf32, #tpu.memory_space<vmem>>, vector<16x32xf32>,
    %c0_54 = arith.constant 0 : index
    %c0_55 = arith.constant 0 : index
    %82 = vector.load %arg18[%c0_54, %c0_55] : memref<64x64xf32, #tpu.memory_space<vmem>>, vector<64x64xf32>
    %cst_56 = arith.constant dense<0.000000e+00> : vector<16x64xf32>
    %83 = tpu.matmul %77, %82, %cst_56 {dimension_numbers = #tpu.dot_dimension_numbers<[1], [0], [0], [1], [0, 0, 1, 1], [], []>} : vector<16x64xf32>, vector<64x64xf32>, vector<16x64xf32> -> vector<16x64xf32>
    %c0_57 = arith.constant 0 : index
    %c0_58 = arith.constant 0 : index
    %84 = vector.load %arg19[%c0_57, %c0_58] : memref<1x64xf32, #tpu.memory_space<vmem>>, vector<1x64xf32>
    %85 = vector.broadcast %84 : vector<1x64xf32> to vector<16x64xf32>
    %86 = arith.addf %83, %85 : vector<16x64xf32>
    %87 = arith.mulf %86, %86 : vector<16x64xf32>
    %88 = arith.mulf %86, %87 : vector<16x64xf32>
    %cst_59 = arith.constant 4.471500e-02 : f32
    %89 = vector.broadcast %cst_59 : f32 to vector<16x64xf32>
    %90 = arith.mulf %89, %88 : vector<16x64xf32>
    %91 = arith.addf %86, %90 : vector<16x64xf32>
    %cst_60 = arith.constant 0.797884583 : f32
    %92 = vector.broadcast %cst_60 : f32 to vector<16x64xf32>
    %93 = arith.mulf %92, %91 : vector<16x64xf32>
    %94 = math.tanh %93 : vector<16x64xf32>
    %cst_61 = arith.constant 1.000000e+00 : f32
    %95 = vector.broadcast %cst_61 : f32 to vector<16x64xf32>
    %96 = arith.addf %95, %94 : vector<16x64xf32>
    %cst_62 = arith.constant 5.000000e-01 : f32
    %97 = vector.broadcast %cst_62 : f32 to vector<16x64xf32>
    %98 = arith.mulf %97, %96 : vector<16x64xf32>
    %99 = arith.mulf %86, %98 : vector<16x64xf32>
    %c0_63 = arith.constant 0 : index
    %c0_64 = arith.constant 0 : index
    %100 = vector.load %arg20[%c0_63, %c0_64] : memref<64x64xf32, #tpu.memory_space<vmem>>, vector<64x64xf32>
    %cst_65 = arith.constant dense<0.000000e+00> : vector<16x64xf32>
    %101 = tpu.matmul %99, %100, %cst_65 {dimension_numbers = #tpu.dot_dimension_numbers<[1], [0], [0], [1], [0, 0, 1, 1], [], []>} : vector<16x64xf32>, vector<64x64xf32>, vector<16x64xf32> -> vector<16x64xf32>
    %c0_66 = arith.constant 0 : index
    %c0_67 = arith.constant 0 : index
    %102 = vector.load %arg21[%c0_66, %c0_67] : memref<1x64xf32, #tpu.memory_space<vmem>>, vector<1x64xf32>
    %103 = vector.broadcast %102 : vector<1x64xf32> to vector<16x64xf32>
    %104 = arith.addf %101, %103 : vector<16x64xf32>
    %105 = arith.addf %104, %86 : vector<16x64xf32>
    %c0_68 = arith.constant 0 : index
    %c0_69 = arith.constant 0 : index
    %106 = vector.load %arg22[%c0_68, %c0_69] : memref<1x64xf32, #tpu.memory_space<vmem>>, vector<1x64xf32>
    %c0_70 = arith.constant 0 : index
    %c0_71 = arith.constant 0 : index
    %107 = vector.load %arg23[%c0_70, %c0_71] : memref<1x64xf32, #tpu.memory_space<vmem>>, vector<1x64xf32>
    %108 = vector.extract_strided_slice %105 {offsets = [0, 0], sizes = [16, 32], strides = [1, 1]} : vector<16x64xf32> to vector<16x32xf32>
    %109 = vector.extract_strided_slice %106 {offsets = [0, 0], sizes = [1, 32], strides = [1, 1]} : vector<1x64xf32> to vector<1x32xf32>
    %110 = vector.extract_strided_slice %107 {offsets = [0, 0], sizes = [1, 32], strides = [1, 1]} : vector<1x64xf32> to vector<1x32xf32>
    %cst_72 = arith.constant dense<0.000000e+00> : vector<16xf32>
    %111 = vector.multi_reduction <add>, %108, %cst_72 [1] : vector<16x32xf32> to vector<16xf32>
    %112 = vector.shape_cast %111 : vector<16xf32> to vector<16x1xf32>
    %cst_73 = arith.constant 3.200000e+01 : f32
    %113 = vector.broadcast %cst_73 : f32 to vector<16x1xf32>
    %114 = arith.divf %112, %113 : vector<16x1xf32>
    %115 = vector.broadcast %114 : vector<16x1xf32> to vector<16x32xf32>
    %116 = arith.subf %108, %115 : vector<16x32xf32>
    %117 = vector.broadcast %114 : vector<16x1xf32> to vector<16x32xf32>
    %118 = arith.subf %108, %117 : vector<16x32xf32>
    %119 = arith.mulf %116, %118 : vector<16x32xf32>
    %cst_74 = arith.constant dense<0.000000e+00> : vector<16xf32>
    %120 = vector.multi_reduction <add>, %119, %cst_74 [1] : vector<16x32xf32> to vector<16xf32>
    %121 = vector.shape_cast %120 : vector<16xf32> to vector<16x1xf32>
    %cst_75 = arith.constant 3.200000e+01 : f32
    %122 = vector.broadcast %cst_75 : f32 to vector<16x1xf32>
    %123 = arith.divf %121, %122 : vector<16x1xf32>
    %124 = vector.broadcast %114 : vector<16x1xf32> to vector<16x32xf32>
    %125 = arith.subf %108, %124 : vector<16x32xf32>
    %cst_76 = arith.constant 9.99999974E-6 : f32
    %126 = vector.broadcast %cst_76 : f32 to vector<16x1xf32>
    %127 = arith.addf %123, %126 : vector<16x1xf32>
    %128 = math.rsqrt %127 : vector<16x1xf32>
    %129 = vector.broadcast %128 : vector<16x1xf32> to vector<16x32xf32>
    %130 = arith.mulf %125, %129 : vector<16x32xf32>
    %131 = vector.broadcast %109 : vector<1x32xf32> to vector<16x32xf32>
    %132 = arith.mulf %130, %131 : vector<16x32xf32>
    %133 = vector.broadcast %110 : vector<1x32xf32> to vector<16x32xf32>
    %134 = arith.addf %132, %133 : vector<16x32xf32>
    %135 = vector.extract_strided_slice %105 {offsets = [0, 32], sizes = [16, 32], strides = [1, 1]} : vector<16x64xf32> to vector<16x32xf32>
    %136 = vector.extract_strided_slice %106 {offsets = [0, 32], sizes = [1, 32], strides = [1, 1]} : vector<1x64xf32> to vector<1x32xf32>
    %137 = vector.extract_strided_slice %107 {offsets = [0, 32], sizes = [1, 32], strides = [1, 1]} : vector<1x64xf32> to vector<1x32xf32>
    %cst_77 = arith.constant dense<0.000000e+00> : vector<16xf32>
    %138 = vector.multi_reduction <add>, %135, %cst_77 [1] : vector<16x32xf32> to vector<16xf32>
    %139 = vector.shape_cast %138 : vector<16xf32> to vector<16x1xf32>
    %cst_78 = arith.constant 3.200000e+01 : f32
    %140 = vector.broadcast %cst_78 : f32 to vector<16x1xf32>
    %141 = arith.divf %139, %140 : vector<16x1xf32>
    %142 = vector.broadcast %141 : vector<16x1xf32> to vector<16x32xf32>
    %143 = arith.subf %135, %142 : vector<16x32xf32>
    %144 = vector.broadcast %141 : vector<16x1xf32> to vector<16x32xf32>
    %145 = arith.subf %135, %144 : vector<16x32xf32>
    %146 = arith.mulf %143, %145 : vector<16x32xf32>
    %cst_79 = arith.constant dense<0.000000e+00> : vector<16xf32>
    %147 = vector.multi_reduction <add>, %146, %cst_79 [1] : vector<16x32xf32> to vector<16xf32>
    %148 = vector.shape_cast %147 : vector<16xf32> to vector<16x1xf32>
    %cst_80 = arith.constant 3.200000e+01 : f32
    %149 = vector.broadcast %cst_80 : f32 to vector<16x1xf32>
    %150 = arith.divf %148, %149 : vector<16x1xf32>
    %151 = vector.broadcast %141 : vector<16x1xf32> to vector<16x32xf32>
    %152 = arith.subf %135, %151 : vector<16x32xf32>
    %cst_81 = arith.constant 9.99999974E-6 : f32
    %153 = vector.broadcast %cst_81 : f32 to vector<16x1xf32>
    %154 = arith.addf %150, %153 : vector<16x1xf32>
    %155 = math.rsqrt %154 : vector<16x1xf32>
    %156 = vector.broadcast %155 : vector<16x1xf32> to vector<16x32xf32>
    %157 = arith.mulf %152, %156 : vector<16x32xf32>
    %158 = vector.broadcast %136 : vector<1x32xf32> to vector<16x32xf32>
    %159 = arith.mulf %157, %158 : vector<16x32xf32>
    %160 = vector.broadcast %137 : vector<1x32xf32> to vector<16x32xf32>
    %161 = arith.addf %159, %160 : vector<16x32xf32>
    %162 = tpu.iota {dimensions = array<i32: 1>} : vector<8x16xi32>
    %c0_82 = arith.constant 0 : index
    %c0_83 = arith.constant 0 : index
    %163 = vector.load %arg24[%c0_82, %c0_83] : memref<8x1xi32, #tpu.memory_space<vmem>>, vector<8x1xi32>
    %164 = vector.broadcast %163 : vector<8x1xi32> to vector<8x16xi32>
    %165 = arith.cmpi eq, %162, %164 : vector<8x16xi32>
    %166 = arith.extui %165 : vector<8x16xi1> to vector<8x16xi32>
    %167 = arith.sitofp %166 : vector<8x16xi32> to vector<8x16xf32>
    %cst_84 = arith.constant dense<0.000000e+00> : vector<8x32xf32>
    %168 = tpu.matmul %167, %134, %cst_84 {dimension_numbers = #tpu.dot_dimension_numbers<[1], [0], [0], [1], [0, 0, 1, 1], [], []>} : vector<8x16xf32>, vector<16x32xf32>, vector<8x32xf32> -> vector<8x32xf32>
    %cst_85 = arith.constant dense<0.000000e+00> : vector<8x32xf32>
    %169 = tpu.matmul %167, %161, %cst_85 {dimension_numbers = #tpu.dot_dimension_numbers<[1], [0], [0], [1], [0, 0, 1, 1], [], []>} : vector<8x16xf32>, vector<16x32xf32>, vector<8x32xf32> -> vector<8x32xf32>
    %cst_86 = arith.constant dense<0.000000e+00> : vector<8x8xf32>
    %170 = tpu.matmul %168, %56, %cst_86 {dimension_numbers = #tpu.dot_dimension_numbers<[1], [1], [0], [0], [0, 0, 1, 0], [], []>} : vector<8x32xf32>, vector<8x32xf32>, vector<8x8xf32> -> vector<8x8xf32>
    %cst_87 = arith.constant 1.000000e+00 : f32
    %171 = vector.broadcast %cst_87 : f32 to vector<8x8xf32>
    %172 = arith.mulf %170, %171 : vector<8x8xf32>
    %cst_88 = arith.constant dense<0.000000e+00> : vector<8x8xf32>
    %173 = tpu.matmul %168, %168, %cst_88 {dimension_numbers = #tpu.dot_dimension_numbers<[1], [1], [0], [0], [0, 0, 1, 0], [], []>} : vector<8x32xf32>, vector<8x32xf32>, vector<8x8xf32> -> vector<8x8xf32>
    %cst_89 = arith.constant dense<0.000000e+00> : vector<8x8xf32>
    %174 = tpu.matmul %56, %56, %cst_89 {dimension_numbers = #tpu.dot_dimension_numbers<[1], [1], [0], [0], [0, 0, 1, 0], [], []>} : vector<8x32xf32>, vector<8x32xf32>, vector<8x8xf32> -> vector<8x8xf32>
    %175 = arith.addf %173, %174 : vector<8x8xf32>
    %cst_90 = arith.constant 5.000000e-01 : f32
    %176 = vector.broadcast %cst_90 : f32 to vector<8x8xf32>
    %177 = arith.mulf %175, %176 : vector<8x8xf32>
    %cst_91 = arith.constant dense<0xFF800000> : vector<8xf32>
    %178 = vector.multi_reduction <maximumf>, %177, %cst_91 [1] : vector<8x8xf32> to vector<8xf32>
    %179 = vector.shape_cast %178 : vector<8xf32> to vector<8x1xf32>
    %180 = vector.broadcast %179 : vector<8x1xf32> to vector<8x8xf32>
    %181 = arith.subf %177, %180 : vector<8x8xf32>
    %182 = math.exp %181 : vector<8x8xf32>
    %cst_92 = arith.constant dense<0.000000e+00> : vector<8xf32>
    %183 = vector.multi_reduction <add>, %182, %cst_92 [1] : vector<8x8xf32> to vector<8xf32>
    %184 = vector.shape_cast %183 : vector<8xf32> to vector<8x1xf32>
    %185 = tpu.reciprocal %184 {approx = true} : vector<8x1xf32> -> vector<8x1xf32>
    %186 = vector.broadcast %185 : vector<8x1xf32> to vector<8x8xf32>
    %187 = arith.mulf %182, %186 : vector<8x8xf32>
    %cst_93 = arith.constant dense<0xFF800000> : vector<8xf32>
    %188 = vector.multi_reduction <maximumf>, %172, %cst_93 [1] : vector<8x8xf32> to vector<8xf32>
    %189 = vector.shape_cast %188 : vector<8xf32> to vector<8x1xf32>
    %190 = vector.broadcast %189 : vector<8x1xf32> to vector<8x8xf32>
    %191 = arith.subf %172, %190 : vector<8x8xf32>
    %192 = math.exp %191 : vector<8x8xf32>
    %cst_94 = arith.constant dense<0.000000e+00> : vector<8xf32>
    %193 = vector.multi_reduction <add>, %192, %cst_94 [1] : vector<8x8xf32> to vector<8xf32>
    %194 = vector.shape_cast %193 : vector<8xf32> to vector<8x1xf32>
    %195 = math.log %194 : vector<8x1xf32>
    %196 = vector.broadcast %195 : vector<8x1xf32> to vector<8x8xf32>
    %197 = arith.subf %191, %196 : vector<8x8xf32>
    %cst_95 = arith.constant dense<0xFF800000> : vector<8xf32>
    %198 = vector.multi_reduction <maximumf>, %172, %cst_95 [0] : vector<8x8xf32> to vector<8xf32>
    %199 = vector.shape_cast %198 : vector<8xf32> to vector<1x8xf32>
    %200 = vector.broadcast %199 : vector<1x8xf32> to vector<8x8xf32>
    %201 = arith.subf %172, %200 : vector<8x8xf32>
    %202 = math.exp %201 : vector<8x8xf32>
    %cst_96 = arith.constant dense<0.000000e+00> : vector<8xf32>
    %203 = vector.multi_reduction <add>, %202, %cst_96 [0] : vector<8x8xf32> to vector<8xf32>
    %204 = vector.shape_cast %203 : vector<8xf32> to vector<1x8xf32>
    %205 = math.log %204 : vector<1x8xf32>
    %206 = vector.broadcast %205 : vector<1x8xf32> to vector<8x8xf32>
    %207 = arith.subf %201, %206 : vector<8x8xf32>
    %cst_97 = arith.constant 0.000000e+00 : f32
    %208 = vector.broadcast %cst_97 : f32 to vector<8x8xf32>
    %209 = arith.subf %208, %187 : vector<8x8xf32>
    %210 = arith.addf %197, %207 : vector<8x8xf32>
    %211 = arith.mulf %209, %210 : vector<8x8xf32>
    %212 = vector.shape_cast %211 : vector<8x8xf32> to vector<1x8x8xf32>
    %cst_98 = arith.constant dense<0.000000e+00> : vector<1xf32>
    %213 = vector.multi_reduction <add>, %212, %cst_98 [1, 2] : vector<1x8x8xf32> to vector<1xf32>
    %214 = vector.shape_cast %213 : vector<1xf32> to vector<1x1x1xf32>
    %215 = vector.extract %214[0, 0, 0] : f32 from vector<1x1x1xf32>
    %216 = vector.broadcast %215 : f32 to vector<1x1xf32>
    %cst_99 = arith.constant 6.250000e-02 : f32
    %217 = vector.broadcast %cst_99 : f32 to vector<1x1xf32>
    %218 = arith.mulf %216, %217 : vector<1x1xf32>
    %cst_100 = arith.constant dense<0.000000e+00> : vector<8x8xf32>
    %219 = tpu.matmul %169, %168, %cst_100 {dimension_numbers = #tpu.dot_dimension_numbers<[1], [1], [0], [0], [0, 0, 1, 0], [], []>} : vector<8x32xf32>, vector<8x32xf32>, vector<8x8xf32> -> vector<8x8xf32>
    %cst_101 = arith.constant 1.000000e+00 : f32
    %220 = vector.broadcast %cst_101 : f32 to vector<8x8xf32>
    %221 = arith.mulf %219, %220 : vector<8x8xf32>
    %cst_102 = arith.constant dense<0.000000e+00> : vector<8x8xf32>
    %222 = tpu.matmul %169, %169, %cst_102 {dimension_numbers = #tpu.dot_dimension_numbers<[1], [1], [0], [0], [0, 0, 1, 0], [], []>} : vector<8x32xf32>, vector<8x32xf32>, vector<8x8xf32> -> vector<8x8xf32>
    %cst_103 = arith.constant dense<0.000000e+00> : vector<8x8xf32>
    %223 = tpu.matmul %168, %168, %cst_103 {dimension_numbers = #tpu.dot_dimension_numbers<[1], [1], [0], [0], [0, 0, 1, 0], [], []>} : vector<8x32xf32>, vector<8x32xf32>, vector<8x8xf32> -> vector<8x8xf32>
    %224 = arith.addf %222, %223 : vector<8x8xf32>
    %cst_104 = arith.constant 5.000000e-01 : f32
    %225 = vector.broadcast %cst_104 : f32 to vector<8x8xf32>
    %226 = arith.mulf %224, %225 : vector<8x8xf32>
    %cst_105 = arith.constant dense<0xFF800000> : vector<8xf32>
    %227 = vector.multi_reduction <maximumf>, %226, %cst_105 [1] : vector<8x8xf32> to vector<8xf32>
    %228 = vector.shape_cast %227 : vector<8xf32> to vector<8x1xf32>
    %229 = vector.broadcast %228 : vector<8x1xf32> to vector<8x8xf32>
    %230 = arith.subf %226, %229 : vector<8x8xf32>
    %231 = math.exp %230 : vector<8x8xf32>
    %cst_106 = arith.constant dense<0.000000e+00> : vector<8xf32>
    %232 = vector.multi_reduction <add>, %231, %cst_106 [1] : vector<8x8xf32> to vector<8xf32>
    %233 = vector.shape_cast %232 : vector<8xf32> to vector<8x1xf32>
    %234 = tpu.reciprocal %233 {approx = true} : vector<8x1xf32> -> vector<8x1xf32>
    %235 = vector.broadcast %234 : vector<8x1xf32> to vector<8x8xf32>
    %236 = arith.mulf %231, %235 : vector<8x8xf32>
    %cst_107 = arith.constant dense<0xFF800000> : vector<8xf32>
    %237 = vector.multi_reduction <maximumf>, %221, %cst_107 [1] : vector<8x8xf32> to vector<8xf32>
    %238 = vector.shape_cast %237 : vector<8xf32> to vector<8x1xf32>
    %239 = vector.broadcast %238 : vector<8x1xf32> to vector<8x8xf32>
    %240 = arith.subf %221, %239 : vector<8x8xf32>
    %241 = math.exp %240 : vector<8x8xf32>
    %cst_108 = arith.constant dense<0.000000e+00> : vector<8xf32>
    %242 = vector.multi_reduction <add>, %241, %cst_108 [1] : vector<8x8xf32> to vector<8xf32>
    %243 = vector.shape_cast %242 : vector<8xf32> to vector<8x1xf32>
    %244 = math.log %243 : vector<8x1xf32>
    %245 = vector.broadcast %244 : vector<8x1xf32> to vector<8x8xf32>
    %246 = arith.subf %240, %245 : vector<8x8xf32>
    %cst_109 = arith.constant dense<0xFF800000> : vector<8xf32>
    %247 = vector.multi_reduction <maximumf>, %221, %cst_109 [0] : vector<8x8xf32> to vector<8xf32>
    %248 = vector.shape_cast %247 : vector<8xf32> to vector<1x8xf32>
    %249 = vector.broadcast %248 : vector<1x8xf32> to vector<8x8xf32>
    %250 = arith.subf %221, %249 : vector<8x8xf32>
    %251 = math.exp %250 : vector<8x8xf32>
    %cst_110 = arith.constant dense<0.000000e+00> : vector<8xf32>
    %252 = vector.multi_reduction <add>, %251, %cst_110 [0] : vector<8x8xf32> to vector<8xf32>
    %253 = vector.shape_cast %252 : vector<8xf32> to vector<1x8xf32>
    %254 = math.log %253 : vector<1x8xf32>
    %255 = vector.broadcast %254 : vector<1x8xf32> to vector<8x8xf32>
    %256 = arith.subf %250, %255 : vector<8x8xf32>
    %cst_111 = arith.constant 0.000000e+00 : f32
    %257 = vector.broadcast %cst_111 : f32 to vector<8x8xf32>
    %258 = arith.subf %257, %236 : vector<8x8xf32>
    %259 = arith.addf %246, %256 : vector<8x8xf32>
    %260 = arith.mulf %258, %259 : vector<8x8xf32>
    %261 = vector.shape_cast %260 : vector<8x8xf32> to vector<1x8x8xf32>
    %cst_112 = arith.constant dense<0.000000e+00> : vector<1xf32>
    %262 = vector.multi_reduction <add>, %261, %cst_112 [1, 2] : vector<1x8x8xf32> to vector<1xf32>
    %263 = vector.shape_cast %262 : vector<1xf32> to vector<1x1x1xf32>
    %264 = vector.extract %263[0, 0, 0] : f32 from vector<1x1x1xf32>
    %265 = vector.broadcast %264 : f32 to vector<1x1xf32>
    %cst_113 = arith.constant 6.250000e-02 : f32
    %266 = vector.broadcast %cst_113 : f32 to vector<1x1xf32>
    %267 = arith.mulf %265, %266 : vector<1x1xf32>
    %268 = arith.addf %218, %267 : vector<1x1xf32>
    %c0_114 = arith.constant 0 : index
    %c0_115 = arith.constant 0 : index
    %269 = vector.load %arg25[%c0_114, %c0_115] : memref<1x1xf32, #tpu.memory_space<vmem>>, vector<1x1xf32>
    tpu.vector_store %arg25[%c0_114, %c0_115], %268 {strides = array<i32>} : memref<1x1xf32, #tpu.memory_space<vmem>>, vector<1x1xf32>,
    return
  }
  func.func @transform_0(%arg0: i32) -> (i32, i32) {
    %c0_i32 = arith.constant 0 : i32
    %c0_i32_0 = arith.constant 0 : i32
    %c0_i32_1 = arith.constant 0 : i32
    return %c0_i32, %c0_i32_0 : i32, i32
  }
  func.func @transform_1(%arg0: i32) -> (i32, i32) {
    %c0_i32 = arith.constant 0 : i32
    %c0_i32_0 = arith.constant 0 : i32
    %c0_i32_1 = arith.constant 0 : i32
    return %c0_i32, %c0_i32_0 : i32, i32
  }
  func.func @transform_2(%arg0: i32) -> (i32, i32) {
    %c0_i32 = arith.constant 0 : i32
    %c0_i32_0 = arith.constant 0 : i32
    %c0_i32_1 = arith.constant 0 : i32
    return %c0_i32, %c0_i32_0 : i32, i32
  }
  func.func @transform_3(%arg0: i32) -> (i32, i32) {
    %c0_i32 = arith.constant 0 : i32
    %c0_i32_0 = arith.constant 0 : i32
    %c0_i32_1 = arith.constant 0 : i32
    return %c0_i32, %c0_i32_0 : i32, i32
  }
  func.func @transform_4(%arg0: i32) -> (i32, i32) {
    %c0_i32 = arith.constant 0 : i32
    %c0_i32_0 = arith.constant 0 : i32
    %c0_i32_1 = arith.constant 0 : i32
    return %c0_i32, %c0_i32_0 : i32, i32
  }
  func.func @transform_5(%arg0: i32) -> (i32, i32) {
    %c0_i32 = arith.constant 0 : i32
    %c0_i32_0 = arith.constant 0 : i32
    %c0_i32_1 = arith.constant 0 : i32
    return %c0_i32, %c0_i32_0 : i32, i32
  }
  func.func @transform_6(%arg0: i32) -> (i32, i32) {
    %c0_i32 = arith.constant 0 : i32
    %c0_i32_0 = arith.constant 0 : i32
    %c0_i32_1 = arith.constant 0 : i32
    return %c0_i32, %c0_i32_0 : i32, i32
  }
  func.func @transform_7(%arg0: i32) -> (i32, i32) {
    %c0_i32 = arith.constant 0 : i32
    %c0_i32_0 = arith.constant 0 : i32
    %c0_i32_1 = arith.constant 0 : i32
    return %c0_i32, %c0_i32_0 : i32, i32
  }
  func.func @transform_8(%arg0: i32) -> (i32, i32) {
    %c0_i32 = arith.constant 0 : i32
    %c0_i32_0 = arith.constant 0 : i32
    %c0_i32_1 = arith.constant 0 : i32
    return %c0_i32, %c0_i32_0 : i32, i32
  }
  func.func @transform_9(%arg0: i32) -> (i32, i32) {
    %c0_i32 = arith.constant 0 : i32
    %c0_i32_0 = arith.constant 0 : i32
    %c0_i32_1 = arith.constant 0 : i32
    return %c0_i32, %c0_i32_0 : i32, i32
  }
  func.func @transform_10(%arg0: i32) -> (i32, i32) {
    %c0_i32 = arith.constant 0 : i32
    %c0_i32_0 = arith.constant 0 : i32
    %c0_i32_1 = arith.constant 0 : i32
    return %c0_i32, %c0_i32_0 : i32, i32
  }
  func.func @transform_11(%arg0: i32) -> (i32, i32) {
    %c0_i32 = arith.constant 0 : i32
    %c0_i32_0 = arith.constant 0 : i32
    %c0_i32_1 = arith.constant 0 : i32
    return %c0_i32, %c0_i32_0 : i32, i32
  }
  func.func @transform_12(%arg0: i32) -> (i32, i32) {
    %c0_i32 = arith.constant 0 : i32
    %c0_i32_0 = arith.constant 0 : i32
    %c0_i32_1 = arith.constant 0 : i32
    return %c0_i32, %c0_i32_0 : i32, i32
  }
  func.func @transform_13(%arg0: i32) -> (i32, i32) {
    %c0_i32 = arith.constant 0 : i32
    %c0_i32_0 = arith.constant 0 : i32
    %c0_i32_1 = arith.constant 0 : i32
    return %c0_i32, %c0_i32_0 : i32, i32
  }
  func.func @transform_14(%arg0: i32) -> (i32, i32) {
    %c0_i32 = arith.constant 0 : i32
    %c0_i32_0 = arith.constant 0 : i32
    %c0_i32_1 = arith.constant 0 : i32
    return %c0_i32, %c0_i32_0 : i32, i32
  }
  func.func @transform_15(%arg0: i32) -> (i32, i32) {
    %c0_i32 = arith.constant 0 : i32
    %c0_i32_0 = arith.constant 0 : i32
    %c0_i32_1 = arith.constant 0 : i32
    return %c0_i32, %c0_i32_0 : i32, i32
  }
  func.func @transform_16(%arg0: i32) -> (i32, i32) {
    %c0_i32 = arith.constant 0 : i32
    %c0_i32_0 = arith.constant 0 : i32
    %c0_i32_1 = arith.constant 0 : i32
    return %c0_i32, %c0_i32_0 : i32, i32
  }
  func.func @transform_17(%arg0: i32) -> (i32, i32) {
    %c0_i32 = arith.constant 0 : i32
    %c0_i32_0 = arith.constant 0 : i32
    %c0_i32_1 = arith.constant 0 : i32
    return %c0_i32, %c0_i32_0 : i32, i32
  }
  func.func @transform_18(%arg0: i32) -> (i32, i32) {
    %c0_i32 = arith.constant 0 : i32
    %c0_i32_0 = arith.constant 0 : i32
    %c0_i32_1 = arith.constant 0 : i32
    return %c0_i32, %c0_i32_0 : i32, i32
  }
  func.func @transform_19(%arg0: i32) -> (i32, i32) {
    %c0_i32 = arith.constant 0 : i32
    %c0_i32_0 = arith.constant 0 : i32
    %c0_i32_1 = arith.constant 0 : i32
    return %c0_i32, %c0_i32_0 : i32, i32
  }
  func.func @transform_20(%arg0: i32) -> (i32, i32) {
    %c0_i32 = arith.constant 0 : i32
    %c0_i32_0 = arith.constant 0 : i32
    %c0_i32_1 = arith.constant 0 : i32
    return %c0_i32, %c0_i32_0 : i32, i32
  }
  func.func @transform_21(%arg0: i32) -> (i32, i32) {
    %c0_i32 = arith.constant 0 : i32
    %c0_i32_0 = arith.constant 0 : i32
    %c0_i32_1 = arith.constant 0 : i32
    return %c0_i32, %c0_i32_0 : i32, i32
  }
  func.func @transform_22(%arg0: i32) -> (i32, i32) {
    %c0_i32 = arith.constant 0 : i32
    %c0_i32_0 = arith.constant 0 : i32
    %c0_i32_1 = arith.constant 0 : i32
    return %c0_i32, %c0_i32_0 : i32, i32
  }
  func.func @transform_23(%arg0: i32) -> (i32, i32) {
    %c0_i32 = arith.constant 0 : i32
    %c0_i32_0 = arith.constant 0 : i32
    %c0_i32_1 = arith.constant 0 : i32
    return %c0_i32, %c0_i32_0 : i32, i32
  }
  func.func @transform_24(%arg0: i32) -> (i32, i32) {
    %c0_i32 = arith.constant 0 : i32
    %c0_i32_0 = arith.constant 0 : i32
    %c0_i32_1 = arith.constant 0 : i32
    return %c0_i32, %c0_i32_0 : i32, i32
  }
  func.func @transform_25(%arg0: i32) -> (i32, i32) {
    %c0_i32 = arith.constant 0 : i32
    %c0_i32_0 = arith.constant 0 : i32
    %c0_i32_1 = arith.constant 0 : i32
    return %c0_i32, %c0_i32_0 : i32, i32
  }
  func.func @transform_26(%arg0: i32) -> (i32, i32) {
    %c0_i32 = arith.constant 0 : i32
    %c0_i32_0 = arith.constant 0 : i32
    %c0_i32_1 = arith.constant 0 : i32
    return %c0_i32, %c0_i32_0 : i32, i32
  }
}

</mosaic_0001>

<llo_original>
// kernel: tpu_custom_call.1
$region0: #{tpu_custom_call.1}
  #allocation0 [shape = 'u32[]', space=smem, size = 0x4, offset = 0x4, fixed_abs, tag = 'smem constant byte address 0x4 - core index']
  #allocation1 [shape = 'u32[72,128]{1,0:T(1,128)}', space=vmem, size = 0x9000, scoped, tag = 'internal scratch']
  %s0 = inlined_call_operand.vmem [shape: f32[8,768], index: 0, kind: input, shape index: {}]
  %s1 = inlined_call_operand.vmem [shape: bf16[768,32], index: 1, kind: input, shape index: {}]
  %s2 = inlined_call_operand.vmem [shape: f32[1,32], index: 2, kind: input, shape index: {}]
  %s3 = inlined_call_operand.vmem [shape: f32[32,32], index: 3, kind: input, shape index: {}]
  %s4 = inlined_call_operand.vmem [shape: f32[1,32], index: 4, kind: input, shape index: {}]
  %s5 = inlined_call_operand.vmem [shape: f32[32,32], index: 5, kind: input, shape index: {}]
  %s6 = inlined_call_operand.vmem [shape: f32[1,32], index: 6, kind: input, shape index: {}]
  %s7 = inlined_call_operand.vmem [shape: f32[1,32], index: 7, kind: input, shape index: {}]
  %s8 = inlined_call_operand.vmem [shape: f32[1,32], index: 8, kind: input, shape index: {}]
  %s9 = inlined_call_operand.vmem [shape: f32[16,32], index: 9, kind: input, shape index: {}]
  %s10 = inlined_call_operand.vmem [shape: f32[16,16], index: 10, kind: input, shape index: {}]
  %s11 = inlined_call_operand.vmem [shape: f32[32,64], index: 11, kind: input, shape index: {}]
  %s12 = inlined_call_operand.vmem [shape: f32[1,64], index: 12, kind: input, shape index: {}]
  %s13 = inlined_call_operand.vmem [shape: f32[64,64], index: 13, kind: input, shape index: {}]
  %s14 = inlined_call_operand.vmem [shape: f32[1,64], index: 14, kind: input, shape index: {}]
  %s15 = inlined_call_operand.vmem [shape: f32[64,64], index: 15, kind: input, shape index: {}]
  %s16 = inlined_call_operand.vmem [shape: f32[1,64], index: 16, kind: input, shape index: {}]
  %s17 = inlined_call_operand.vmem [shape: f32[64,64], index: 17, kind: input, shape index: {}]
  %s18 = inlined_call_operand.vmem [shape: f32[1,64], index: 18, kind: input, shape index: {}]
  %s19 = inlined_call_operand.vmem [shape: f32[64,64], index: 19, kind: input, shape index: {}]
  %s20 = inlined_call_operand.vmem [shape: f32[1,64], index: 20, kind: input, shape index: {}]
  %s21 = inlined_call_operand.vmem [shape: f32[1,64], index: 21, kind: input, shape index: {}]
  %s22 = inlined_call_operand.vmem [shape: f32[1,64], index: 22, kind: input, shape index: {}]
  %s23 = inlined_call_operand.vmem [shape: s32[8,1], index: 23, kind: input, shape index: {}]
  %s24 = inlined_call_operand.hbm [shape: f32[1,1], index: 24, kind: output, shape index: {0}]
  %s25 = inlined_call_operand.hbm [shape: f32[16,32], index: 25, kind: output, shape index: {1}]
  %s26 = inlined_call_operand.hbm [shape: f32[16,32], index: 26, kind: output, shape index: {2}]
  %27 = xla_tuple %s24, %s25, %s26
  %s28 = sld [smem:[#allocation0]]
  $region122: #{tpu_custom_call.1} parent=0
    _
  %s30 = ssub.s32 1, %s28
  %s31 = scalar_select 0, %s30, %s28
  $region1: #{tpu_custom_call.1} parent=0
    #allocation2 [shape = 'u8[512]{0}', space=vmem, size = 0x400, scoped, tag = 'output window, operand 0, single buffered']
    #allocation3 [shape = 's32[1]{0}', space=sflag, size = 0x4, scoped, tag = 'scoped memory for tpu_custom_call.1']
    #allocation4 [shape = 'u8[8192]{0}', space=vmem, size = 0x2000, scoped, tag = 'output window, operand 1, single buffered']
    #allocation5 [shape = 's32[1]{0}', space=sflag, size = 0x4, scoped, tag = 'scoped memory for tpu_custom_call.1']
    #allocation6 [shape = 'u8[8192]{0}', space=vmem, size = 0x2000, scoped, tag = 'output window, operand 2, single buffered']
    %32 = vsyncpa [#allocation3], 0
    %33 = vsyncpa [#allocation5], 0
    // Predicated region
    $region2: #{tpu_custom_call.1} parent=1 // pred_check
      _
    $region3: #{tpu_custom_call.1} parent=1 // pred_check_branch
      %35 = sbr.rel (0) target = $region5
    $region4: #{tpu_custom_call.1} parent=1 // pred_region
      _
    $region5: #{tpu_custom_call.1} parent=1 // pred_fallthru
      _
    // Predicated region
    $region6: #{tpu_custom_call.1} parent=1 // pred_check
      _
    $region7: #{tpu_custom_call.1} parent=1 // pred_check_branch
      %37 = sbr.rel (0) target = $region9
    $region8: #{tpu_custom_call.1} parent=1 // pred_region
      _
    $region9: #{tpu_custom_call.1} parent=1 // pred_fallthru
      _
    // Predicated region
    $region10: #{tpu_custom_call.1} parent=1 // pred_check
      _
    $region11: #{tpu_custom_call.1} parent=1 // pred_check_branch
      %39 = sbr.rel (0) target = $region13
    $region12: #{tpu_custom_call.1} parent=1 // pred_region
      _
    $region13: #{tpu_custom_call.1} parent=1 // pred_fallthru
      _
    // Predicated region
    $region14: #{tpu_custom_call.1} parent=1 // pred_check
      _
    $region15: #{tpu_custom_call.1} parent=1 // pred_check_branch
      %41 = sbr.rel (0) target = $region17
    $region16: #{tpu_custom_call.1} parent=1 // pred_region
      _
    $region17: #{tpu_custom_call.1} parent=1 // pred_fallthru
      _
    // Predicated region
    $region18: #{tpu_custom_call.1} parent=1 // pred_check
      _
    $region19: #{tpu_custom_call.1} parent=1 // pred_check_branch
      %43 = sbr.rel (0) target = $region21
    $region20: #{tpu_custom_call.1} parent=1 // pred_region
      _
    $region21: #{tpu_custom_call.1} parent=1 // pred_fallthru
      _
    // Predicated region
    $region22: #{tpu_custom_call.1} parent=1 // pred_check
      _
    $region23: #{tpu_custom_call.1} parent=1 // pred_check_branch
      %45 = sbr.rel (0) target = $region25
    $region24: #{tpu_custom_call.1} parent=1 // pred_region
      _
    $region25: #{tpu_custom_call.1} parent=1 // pred_fallthru
      _
    // Predicated region
    $region26: #{tpu_custom_call.1} parent=1 // pred_check
      _
    $region27: #{tpu_custom_call.1} parent=1 // pred_check_branch
      %47 = sbr.rel (0) target = $region29
    $region28: #{tpu_custom_call.1} parent=1 // pred_region
      _
    $region29: #{tpu_custom_call.1} parent=1 // pred_fallthru
      _
    // Predicated region
    $region30: #{tpu_custom_call.1} parent=1 // pred_check
      _
    $region31: #{tpu_custom_call.1} parent=1 // pred_check_branch
      %49 = sbr.rel (0) target = $region33
    $region32: #{tpu_custom_call.1} parent=1 // pred_region
      _
    $region33: #{tpu_custom_call.1} parent=1 // pred_fallthru
      _
    // Predicated region
    $region34: #{tpu_custom_call.1} parent=1 // pred_check
      _
    $region35: #{tpu_custom_call.1} parent=1 // pred_check_branch
      %51 = sbr.rel (0) target = $region37
    $region36: #{tpu_custom_call.1} parent=1 // pred_region
      _
    $region37: #{tpu_custom_call.1} parent=1 // pred_fallthru
      _
    // Predicated region
    $region38: #{tpu_custom_call.1} parent=1 // pred_check
      _
    $region39: #{tpu_custom_call.1} parent=1 // pred_check_branch
      %53 = sbr.rel (0) target = $region41
    $region40: #{tpu_custom_call.1} parent=1 // pred_region
      _
    $region41: #{tpu_custom_call.1} parent=1 // pred_fallthru
      _
    // Predicated region
    $region42: #{tpu_custom_call.1} parent=1 // pred_check
      _
    $region43: #{tpu_custom_call.1} parent=1 // pred_check_branch
      %55 = sbr.rel (0) target = $region45
    $region44: #{tpu_custom_call.1} parent=1 // pred_region
      _
    $region45: #{tpu_custom_call.1} parent=1 // pred_fallthru
      _
    // Predicated region
    $region46: #{tpu_custom_call.1} parent=1 // pred_check
      _
    $region47: #{tpu_custom_call.1} parent=1 // pred_check_branch
      %57 = sbr.rel (0) target = $region49
    $region48: #{tpu_custom_call.1} parent=1 // pred_region
      _
    $region49: #{tpu_custom_call.1} parent=1 // pred_fallthru
      _
    // Predicated region
    $region50: #{tpu_custom_call.1} parent=1 // pred_check
      _
    $region51: #{tpu_custom_call.1} parent=1 // pred_check_branch
      %59 = sbr.rel (0) target = $region53
    $region52: #{tpu_custom_call.1} parent=1 // pred_region
      _
    $region53: #{tpu_custom_call.1} parent=1 // pred_fallthru
      _
    // Predicated region
    $region54: #{tpu_custom_call.1} parent=1 // pred_check
      _
    $region55: #{tpu_custom_call.1} parent=1 // pred_check_branch
      %61 = sbr.rel (0) target = $region57
    $region56: #{tpu_custom_call.1} parent=1 // pred_region
      _
    $region57: #{tpu_custom_call.1} parent=1 // pred_fallthru
      _
    // Predicated region
    $region58: #{tpu_custom_call.1} parent=1 // pred_check
      _
    $region59: #{tpu_custom_call.1} parent=1 // pred_check_branch
      %63 = sbr.rel (0) target = $region61
    $region60: #{tpu_custom_call.1} parent=1 // pred_region
      _
    $region61: #{tpu_custom_call.1} parent=1 // pred_fallthru
      _
    // Predicated region
    $region62: #{tpu_custom_call.1} parent=1 // pred_check
      _
    $region63: #{tpu_custom_call.1} parent=1 // pred_check_branch
      %65 = sbr.rel (0) target = $region65
    $region64: #{tpu_custom_call.1} parent=1 // pred_region
      _
    $region65: #{tpu_custom_call.1} parent=1 // pred_fallthru
      _
    // Predicated region
    $region66: #{tpu_custom_call.1} parent=1 // pred_check
      _
    $region67: #{tpu_custom_call.1} parent=1 // pred_check_branch
      %67 = sbr.rel (0) target = $region69
    $region68: #{tpu_custom_call.1} parent=1 // pred_region
      _
    $region69: #{tpu_custom_call.1} parent=1 // pred_fallthru
      _
    // Predicated region
    $region70: #{tpu_custom_call.1} parent=1 // pred_check
      _
    $region71: #{tpu_custom_call.1} parent=1 // pred_check_branch
      %69 = sbr.rel (0) target = $region73
    $region72: #{tpu_custom_call.1} parent=1 // pred_region
      _
    $region73: #{tpu_custom_call.1} parent=1 // pred_fallthru
      _
    // Predicated region
    $region74: #{tpu_custom_call.1} parent=1 // pred_check
      _
    $region75: #{tpu_custom_call.1} parent=1 // pred_check_branch
      %71 = sbr.rel (0) target = $region77
    $region76: #{tpu_custom_call.1} parent=1 // pred_region
      _
    $region77: #{tpu_custom_call.1} parent=1 // pred_fallthru
      _
    // Predicated region
    $region78: #{tpu_custom_call.1} parent=1 // pred_check
      _
    $region79: #{tpu_custom_call.1} parent=1 // pred_check_branch
      %73 = sbr.rel (0) target = $region81
    $region80: #{tpu_custom_call.1} parent=1 // pred_region
      _
    $region81: #{tpu_custom_call.1} parent=1 // pred_fallthru
      _
    // Predicated region
    $region82: #{tpu_custom_call.1} parent=1 // pred_check
      _
    $region83: #{tpu_custom_call.1} parent=1 // pred_check_branch
      %75 = sbr.rel (0) target = $region85
    $region84: #{tpu_custom_call.1} parent=1 // pred_region
      _
    $region85: #{tpu_custom_call.1} parent=1 // pred_fallthru
      _
    // Predicated region
    $region86: #{tpu_custom_call.1} parent=1 // pred_check
      _
    $region87: #{tpu_custom_call.1} parent=1 // pred_check_branch
      %77 = sbr.rel (0) target = $region89
    $region88: #{tpu_custom_call.1} parent=1 // pred_region
      _
    $region89: #{tpu_custom_call.1} parent=1 // pred_fallthru
      _
    // Predicated region
    $region90: #{tpu_custom_call.1} parent=1 // pred_check
      _
    $region91: #{tpu_custom_call.1} parent=1 // pred_check_branch
      %79 = sbr.rel (0) target = $region93
    $region92: #{tpu_custom_call.1} parent=1 // pred_region
      _
    $region93: #{tpu_custom_call.1} parent=1 // pred_fallthru
      _
    // Predicated region
    $region94: #{tpu_custom_call.1} parent=1 // pred_check
      _
    $region95: #{tpu_custom_call.1} parent=1 // pred_check_branch
      %81 = sbr.rel (0) target = $region97
    $region96: #{tpu_custom_call.1} parent=1 // pred_region
      _
    $region97: #{tpu_custom_call.1} parent=1 // pred_fallthru
      _
    %v82 = vld [vmem:[%s0] sm:$0xff]
    %v83 = vld [vmem:[%s0 + $0x8] sm:$0xff]
    %v84 = vld [vmem:[%s0 + $0x10] sm:$0xff]
    %v85 = vld [vmem:[%s0 + $0x18] sm:$0xff]
    %v86 = vld [vmem:[%s0 + $0x20] sm:$0xff]
    %v87 = vld [vmem:[%s0 + $0x28] sm:$0xff]
    %v88 = vpack.c.bf16 %v82, %v82
    %v89 = vpack.c.bf16 %v83, %v83
    %v90 = vpack.c.bf16 %v84, %v84
    %v91 = vpack.c.bf16 %v85, %v85
    %v92 = vpack.c.bf16 %v86, %v86
    %v93 = vpack.c.bf16 %v87, %v87
    %v94 = vld [vmem:[%s1] sm:$0xf]
    %v95 = vld [vmem:[%s1 + $0x4] sm:$0xf]
    %v96 = vld [vmem:[%s1 + $0x8] sm:$0xf]
    %v97 = vld [vmem:[%s1 + $0xc] sm:$0xf]
    %v98 = vld [vmem:[%s1 + $0x10] sm:$0xf]
    %v99 = vld [vmem:[%s1 + $0x14] sm:$0xf]
    %v100 = vld [vmem:[%s1 + $0x18] sm:$0xf]
    %v101 = vld [vmem:[%s1 + $0x1c] sm:$0xf]
    %v102 = vld [vmem:[%s1 + $0x20] sm:$0xf]
    %v103 = vld [vmem:[%s1 + $0x24] sm:$0xf]
    %v104 = vld [vmem:[%s1 + $0x28] sm:$0xf]
    %v105 = vld [vmem:[%s1 + $0x2c] sm:$0xf]
    %v106 = vld [vmem:[%s1 + $0x30] sm:$0xf]
    %v107 = vld [vmem:[%s1 + $0x34] sm:$0xf]
    %v108 = vld [vmem:[%s1 + $0x38] sm:$0xf]
    %v109 = vld [vmem:[%s1 + $0x3c] sm:$0xf]
    %v110 = vld [vmem:[%s1 + $0x40] sm:$0xf]
    %v111 = vld [vmem:[%s1 + $0x44] sm:$0xf]
    %v112 = vld [vmem:[%s1 + $0x48] sm:$0xf]
    %v113 = vld [vmem:[%s1 + $0x4c] sm:$0xf]
    %v114 = vld [vmem:[%s1 + $0x50] sm:$0xf]
    %v115 = vld [vmem:[%s1 + $0x54] sm:$0xf]
    %v116 = vld [vmem:[%s1 + $0x58] sm:$0xf]
    %v117 = vld [vmem:[%s1 + $0x5c] sm:$0xf]
    %v118 = vld [vmem:[%s1 + $0x60] sm:$0xf]
    %v119 = vld [vmem:[%s1 + $0x64] sm:$0xf]
    %v120 = vld [vmem:[%s1 + $0x68] sm:$0xf]
    %v121 = vld [vmem:[%s1 + $0x6c] sm:$0xf]
    %v122 = vld [vmem:[%s1 + $0x70] sm:$0xf]
    %v123 = vld [vmem:[%s1 + $0x74] sm:$0xf]
    %v124 = vld [vmem:[%s1 + $0x78] sm:$0xf]
    %v125 = vld [vmem:[%s1 + $0x7c] sm:$0xf]
    %v126 = vld [vmem:[%s1 + $0x80] sm:$0xf]
    %v127 = vld [vmem:[%s1 + $0x84] sm:$0xf]
    %v128 = vld [vmem:[%s1 + $0x88] sm:$0xf]
    %v129 = vld [vmem:[%s1 + $0x8c] sm:$0xf]
    %v130 = vld [vmem:[%s1 + $0x90] sm:$0xf]
    %v131 = vld [vmem:[%s1 + $0x94] sm:$0xf]
    %v132 = vld [vmem:[%s1 + $0x98] sm:$0xf]
    %v133 = vld [vmem:[%s1 + $0x9c] sm:$0xf]
    %v134 = vld [vmem:[%s1 + $0xa0] sm:$0xf]
    %v135 = vld [vmem:[%s1 + $0xa4] sm:$0xf]
    %v136 = vld [vmem:[%s1 + $0xa8] sm:$0xf]
    %v137 = vld [vmem:[%s1 + $0xac] sm:$0xf]
    %v138 = vld [vmem:[%s1 + $0xb0] sm:$0xf]
    %v139 = vld [vmem:[%s1 + $0xb4] sm:$0xf]
    %v140 = vld [vmem:[%s1 + $0xb8] sm:$0xf]
    %v141 = vld [vmem:[%s1 + $0xbc] sm:$0xf]
    %v142 = vld [vmem:[%s1 + $0xc0] sm:$0xf]
    %v143 = vld [vmem:[%s1 + $0xc4] sm:$0xf]
    %v144 = vld [vmem:[%s1 + $0xc8] sm:$0xf]
    %v145 = vld [vmem:[%s1 + $0xcc] sm:$0xf]
    %v146 = vld [vmem:[%s1 + $0xd0] sm:$0xf]
    %v147 = vld [vmem:[%s1 + $0xd4] sm:$0xf]
    %v148 = vld [vmem:[%s1 + $0xd8] sm:$0xf]
    %v149 = vld [vmem:[%s1 + $0xdc] sm:$0xf]
    %v150 = vld [vmem:[%s1 + $0xe0] sm:$0xf]
    %v151 = vld [vmem:[%s1 + $0xe4] sm:$0xf]
    %v152 = vld [vmem:[%s1 + $0xe8] sm:$0xf]
    %v153 = vld [vmem:[%s1 + $0xec] sm:$0xf]
    %v154 = vld [vmem:[%s1 + $0xf0] sm:$0xf]
    %v155 = vld [vmem:[%s1 + $0xf4] sm:$0xf]
    %v156 = vld [vmem:[%s1 + $0xf8] sm:$0xf]
    %v157 = vld [vmem:[%s1 + $0xfc] sm:$0xf]
    %v158 = vld [vmem:[%s1 + $0x100] sm:$0xf]
    %v159 = vld [vmem:[%s1 + $0x104] sm:$0xf]
    %v160 = vld [vmem:[%s1 + $0x108] sm:$0xf]
    %v161 = vld [vmem:[%s1 + $0x10c] sm:$0xf]
    %v162 = vld [vmem:[%s1 + $0x110] sm:$0xf]
    %v163 = vld [vmem:[%s1 + $0x114] sm:$0xf]
    %v164 = vld [vmem:[%s1 + $0x118] sm:$0xf]
    %v165 = vld [vmem:[%s1 + $0x11c] sm:$0xf]
    %v166 = vld [vmem:[%s1 + $0x120] sm:$0xf]
    %v167 = vld [vmem:[%s1 + $0x124] sm:$0xf]
    %v168 = vld [vmem:[%s1 + $0x128] sm:$0xf]
    %v169 = vld [vmem:[%s1 + $0x12c] sm:$0xf]
    %v170 = vld [vmem:[%s1 + $0x130] sm:$0xf]
    %v171 = vld [vmem:[%s1 + $0x134] sm:$0xf]
    %v172 = vld [vmem:[%s1 + $0x138] sm:$0xf]
    %v173 = vld [vmem:[%s1 + $0x13c] sm:$0xf]
    %v174 = vld [vmem:[%s1 + $0x140] sm:$0xf]
    %v175 = vld [vmem:[%s1 + $0x144] sm:$0xf]
    %v176 = vld [vmem:[%s1 + $0x148] sm:$0xf]
    %v177 = vld [vmem:[%s1 + $0x14c] sm:$0xf]
    %v178 = vld [vmem:[%s1 + $0x150] sm:$0xf]
    %v179 = vld [vmem:[%s1 + $0x154] sm:$0xf]
    %v180 = vld [vmem:[%s1 + $0x158] sm:$0xf]
    %v181 = vld [vmem:[%s1 + $0x15c] sm:$0xf]
    %v182 = vld [vmem:[%s1 + $0x160] sm:$0xf]
    %v183 = vld [vmem:[%s1 + $0x164] sm:$0xf]
    %v184 = vld [vmem:[%s1 + $0x168] sm:$0xf]
    %v185 = vld [vmem:[%s1 + $0x16c] sm:$0xf]
    %v186 = vld [vmem:[%s1 + $0x170] sm:$0xf]
    %v187 = vld [vmem:[%s1 + $0x174] sm:$0xf]
    %v188 = vld [vmem:[%s1 + $0x178] sm:$0xf]
    %v189 = vld [vmem:[%s1 + $0x17c] sm:$0xf]
    %v190 = vld [vmem:[%s2] sm:$0x1]
    %v192 = vperm.slane %v190, 0
    %v290 = vunpack.c.l.b16 %v94
    %v291 = vunpack.c.l.b16 %v95
    %v292 = vunpack.c.l.b16 %v96
    %v293 = vunpack.c.l.b16 %v97
    %v294 = vunpack.c.l.b16 %v98
    %v295 = vunpack.c.l.b16 %v99
    %v296 = vunpack.c.l.b16 %v100
    %v297 = vunpack.c.l.b16 %v101
    %v298 = vunpack.c.l.b16 %v102
    %v299 = vunpack.c.l.b16 %v103
    %v300 = vunpack.c.l.b16 %v104
    %v301 = vunpack.c.l.b16 %v105
    %v302 = vunpack.c.l.b16 %v106
    %v303 = vunpack.c.l.b16 %v107
    %v304 = vunpack.c.l.b16 %v108
    %v305 = vunpack.c.l.b16 %v109
    %v306 = vunpack.c.l.b16 %v110
    %v307 = vunpack.c.l.b16 %v111
    %v308 = vunpack.c.l.b16 %v112
    %v309 = vunpack.c.l.b16 %v113
    %v310 = vunpack.c.l.b16 %v114
    %v311 = vunpack.c.l.b16 %v115
    %v312 = vunpack.c.l.b16 %v116
    %v313 = vunpack.c.l.b16 %v117
    %v314 = vunpack.c.l.b16 %v118
    %v315 = vunpack.c.l.b16 %v119
    %v316 = vunpack.c.l.b16 %v120
    %v317 = vunpack.c.l.b16 %v121
    %v318 = vunpack.c.l.b16 %v122
    %v319 = vunpack.c.l.b16 %v123
    %v320 = vunpack.c.l.b16 %v124
    %v321 = vunpack.c.l.b16 %v125
    %v322 = vunpack.c.l.b16 %v126
    %v323 = vunpack.c.l.b16 %v127
    %v324 = vunpack.c.l.b16 %v128
    %v325 = vunpack.c.l.b16 %v129
    %v326 = vunpack.c.l.b16 %v130
    %v327 = vunpack.c.l.b16 %v131
    %v328 = vunpack.c.l.b16 %v132
    %v329 = vunpack.c.l.b16 %v133
    %v330 = vunpack.c.l.b16 %v134
    %v331 = vunpack.c.l.b16 %v135
    %v332 = vunpack.c.l.b16 %v136
    %v333 = vunpack.c.l.b16 %v137
    %v334 = vunpack.c.l.b16 %v138
    %v335 = vunpack.c.l.b16 %v139
    %v336 = vunpack.c.l.b16 %v140
    %v337 = vunpack.c.l.b16 %v141
    %v338 = vunpack.c.l.b16 %v142
    %v339 = vunpack.c.l.b16 %v143
    %v340 = vunpack.c.l.b16 %v144
    %v341 = vunpack.c.l.b16 %v145
    %v342 = vunpack.c.l.b16 %v146
    %v343 = vunpack.c.l.b16 %v147
    %v344 = vunpack.c.l.b16 %v148
    %v345 = vunpack.c.l.b16 %v149
    %v346 = vunpack.c.l.b16 %v150
    %v347 = vunpack.c.l.b16 %v151
    %v348 = vunpack.c.l.b16 %v152
    %v349 = vunpack.c.l.b16 %v153
    %v350 = vunpack.c.l.b16 %v154
    %v351 = vunpack.c.l.b16 %v155
    %v352 = vunpack.c.l.b16 %v156
    %v353 = vunpack.c.l.b16 %v157
    %v354 = vunpack.c.l.b16 %v158
    %v355 = vunpack.c.l.b16 %v159
    %v356 = vunpack.c.l.b16 %v160
    %v357 = vunpack.c.l.b16 %v161
    %v358 = vunpack.c.l.b16 %v162
    %v359 = vunpack.c.l.b16 %v163
    %v360 = vunpack.c.l.b16 %v164
    %v361 = vunpack.c.l.b16 %v165
    %v362 = vunpack.c.l.b16 %v166
    %v363 = vunpack.c.l.b16 %v167
    %v364 = vunpack.c.l.b16 %v168
    %v365 = vunpack.c.l.b16 %v169
    %v366 = vunpack.c.l.b16 %v170
    %v367 = vunpack.c.l.b16 %v171
    %v368 = vunpack.c.l.b16 %v172
    %v369 = vunpack.c.l.b16 %v173
    %v370 = vunpack.c.l.b16 %v174
    %v371 = vunpack.c.l.b16 %v175
    %v372 = vunpack.c.l.b16 %v176
    %v373 = vunpack.c.l.b16 %v177
    %v374 = vunpack.c.l.b16 %v178
    %v375 = vunpack.c.l.b16 %v179
    %v376 = vunpack.c.l.b16 %v180
    %v377 = vunpack.c.l.b16 %v181
    %v378 = vunpack.c.l.b16 %v182
    %v379 = vunpack.c.l.b16 %v183
    %v380 = vunpack.c.l.b16 %v184
    %v381 = vunpack.c.l.b16 %v185
    %v382 = vunpack.c.l.b16 %v186
    %v383 = vunpack.c.l.b16 %v187
    %v384 = vunpack.c.l.b16 %v188
    %v385 = vunpack.c.l.b16 %v189
    %v386 = vpack.c.b16 %v291, %v290
    %v387 = vpack.c.b16 %v293, %v292
    %v388 = vpack.c.b16 %v295, %v294
    %v389 = vpack.c.b16 %v297, %v296
    %v390 = vpack.c.b16 %v299, %v298
    %v391 = vpack.c.b16 %v301, %v300
    %v392 = vpack.c.b16 %v303, %v302
    %v393 = vpack.c.b16 %v305, %v304
    %v394 = vpack.c.b16 %v307, %v306
    %v395 = vpack.c.b16 %v309, %v308
    %v396 = vpack.c.b16 %v311, %v310
    %v397 = vpack.c.b16 %v313, %v312
    %v398 = vpack.c.b16 %v315, %v314
    %v399 = vpack.c.b16 %v317, %v316
    %v400 = vpack.c.b16 %v319, %v318
    %v401 = vpack.c.b16 %v321, %v320
    %v402 = vpack.c.b16 %v323, %v322
    %v403 = vpack.c.b16 %v325, %v324
    %v404 = vpack.c.b16 %v327, %v326
    %v405 = vpack.c.b16 %v329, %v328
    %v406 = vpack.c.b16 %v331, %v330
    %v407 = vpack.c.b16 %v333, %v332
    %v408 = vpack.c.b16 %v335, %v334
    %v409 = vpack.c.b16 %v337, %v336
    %v410 = vpack.c.b16 %v339, %v338
    %v411 = vpack.c.b16 %v341, %v340
    %v412 = vpack.c.b16 %v343, %v342
    %v413 = vpack.c.b16 %v345, %v344
    %v414 = vpack.c.b16 %v347, %v346
    %v415 = vpack.c.b16 %v349, %v348
    %v416 = vpack.c.b16 %v351, %v350
    %v417 = vpack.c.b16 %v353, %v352
    %v418 = vpack.c.b16 %v355, %v354
    %v419 = vpack.c.b16 %v357, %v356
    %v420 = vpack.c.b16 %v359, %v358
    %v421 = vpack.c.b16 %v361, %v360
    %v422 = vpack.c.b16 %v363, %v362
    %v423 = vpack.c.b16 %v365, %v364
    %v424 = vpack.c.b16 %v367, %v366
    %v425 = vpack.c.b16 %v369, %v368
    %v426 = vpack.c.b16 %v371, %v370
    %v427 = vpack.c.b16 %v373, %v372
    %v428 = vpack.c.b16 %v375, %v374
    %v429 = vpack.c.b16 %v377, %v376
    %v430 = vpack.c.b16 %v379, %v378
    %v431 = vpack.c.b16 %v381, %v380
    %v432 = vpack.c.b16 %v383, %v382
    %v433 = vpack.c.b16 %v385, %v384
    %482 = vmatpush.bf16.msra.mxu0 %v393
    %483 = vmatpush.bf16.msra.mxu0 %v392
    %484 = vmatpush.bf16.msra.mxu0 %v391
    %485 = vmatpush.bf16.msra.mxu0 %v390
    %486 = vmatpush.bf16.msra.mxu0 %v389
    %487 = vmatpush.bf16.msra.mxu0 %v388
    %488 = vmatpush.bf16.msra.mxu0 %v387
    %489 = vmatpush.bf16.msra.mxu0 %v386
    %490 = vmatmul.bf16.gmra.mxu0 %v88
    %v491 = vpop.f32.mrf.mxu0
    %v492 = vadd.f32 %v192, %v491
    %v493 = vpop.f32.mrf.mxu0
    %494 = vdwg.mxu0
    %495 = vmatpush.bf16.msra.mxu0 %v401
    %496 = vmatpush.bf16.msra.mxu0 %v400
    %497 = vmatpush.bf16.msra.mxu0 %v399
    %498 = vmatpush.bf16.msra.mxu0 %v398
    %499 = vmatpush.bf16.msra.mxu0 %v397
    %500 = vmatpush.bf16.msra.mxu0 %v396
    %501 = vmatpush.bf16.msra.mxu0 %v395
    %502 = vmatpush.bf16.msra.mxu0 %v394
    %503 = vmatmul.bf16.gmra.mxu0 %v89
    %v504 = vpop.f32.mrf.mxu0
    %v505 = vadd.f32 %v492, %v504
    %v506 = vpop.f32.mrf.mxu0
    %507 = vdwg.mxu0
    %508 = vmatpush.bf16.msra.mxu0 %v409
    %509 = vmatpush.bf16.msra.mxu0 %v408
    %510 = vmatpush.bf16.msra.mxu0 %v407
    %511 = vmatpush.bf16.msra.mxu0 %v406
    %512 = vmatpush.bf16.msra.mxu0 %v405
    %513 = vmatpush.bf16.msra.mxu0 %v404
    %514 = vmatpush.bf16.msra.mxu0 %v403
    %515 = vmatpush.bf16.msra.mxu0 %v402
    %516 = vmatmul.bf16.gmra.mxu0 %v90
    %v517 = vpop.f32.mrf.mxu0
    %v518 = vadd.f32 %v505, %v517
    %v519 = vpop.f32.mrf.mxu0
    %520 = vdwg.mxu0
    %521 = vmatpush.bf16.msra.mxu0 %v417
    %522 = vmatpush.bf16.msra.mxu0 %v416
    %523 = vmatpush.bf16.msra.mxu0 %v415
    %524 = vmatpush.bf16.msra.mxu0 %v414
    %525 = vmatpush.bf16.msra.mxu0 %v413
    %526 = vmatpush.bf16.msra.mxu0 %v412
    %527 = vmatpush.bf16.msra.mxu0 %v411
    %528 = vmatpush.bf16.msra.mxu0 %v410
    %529 = vmatmul.bf16.gmra.mxu0 %v91
    %v530 = vpop.f32.mrf.mxu0
    %v531 = vadd.f32 %v518, %v530
    %v532 = vpop.f32.mrf.mxu0
    %533 = vdwg.mxu0
    %534 = vmatpush.bf16.msra.mxu0 %v425
    %535 = vmatpush.bf16.msra.mxu0 %v424
    %536 = vmatpush.bf16.msra.mxu0 %v423
    %537 = vmatpush.bf16.msra.mxu0 %v422
    %538 = vmatpush.bf16.msra.mxu0 %v421
    %539 = vmatpush.bf16.msra.mxu0 %v420
    %540 = vmatpush.bf16.msra.mxu0 %v419
    %541 = vmatpush.bf16.msra.mxu0 %v418
    %542 = vmatmul.bf16.gmra.mxu0 %v92
    %v543 = vpop.f32.mrf.mxu0
    %v544 = vadd.f32 %v531, %v543
    %v545 = vpop.f32.mrf.mxu0
    %546 = vdwg.mxu0
    %547 = vmatpush.bf16.msra.mxu0 %v433
    %548 = vmatpush.bf16.msra.mxu0 %v432
    %549 = vmatpush.bf16.msra.mxu0 %v431
    %550 = vmatpush.bf16.msra.mxu0 %v430
    %551 = vmatpush.bf16.msra.mxu0 %v429
    %552 = vmatpush.bf16.msra.mxu0 %v428
    %553 = vmatpush.bf16.msra.mxu0 %v427
    %554 = vmatpush.bf16.msra.mxu0 %v426
    %555 = vmatmul.bf16.gmra.mxu0 %v93
    %v556 = vpop.f32.mrf.mxu0
    %v557 = vadd.f32 %v544, %v556
    %v558 = vpop.f32.mrf.mxu0
    %559 = vdwg.mxu0
    %v560 = vld [vmem:[%s3] sm:$0xff]
    %v561 = vld [vmem:[%s3 + $0x8] sm:$0xff]
    %v562 = vld [vmem:[%s3 + $0x10] sm:$0xff]
    %v563 = vld [vmem:[%s3 + $0x18] sm:$0xff]
    %v564 = vld [vmem:[%s4] sm:$0x1]
    %v566 = vperm.slane %v564, 0
    %vm568 = vcmask 261120
    %v570 = vsel %vm568, %v557, 0
    %572 = vmatpush.msra.mxu0 0.0
    %573 = vmatpush.msra.mxu0 0.0
    %574 = vmatpush.msra.mxu0 0.0
    %575 = vmatpush.msra.mxu0 0.0
    %576 = vmatpush.msra.mxu0 0.0
    %577 = vmatpush.msra.mxu0 0.0
    %578 = vmatpush.msra.mxu0 0.0
    %579 = vmatpush.msra.mxu0 0.0
    %580 = vmatpush.msra.mxu0 0.0
    %581 = vmatpush.msra.mxu0 0.0
    %582 = vmatpush.msra.mxu0 0.0
    %583 = vmatpush.msra.mxu0 0.0
    %584 = vmatpush.msra.mxu0 %v563
    %585 = vmatpush.msra.mxu0 %v562
    %586 = vmatpush.msra.mxu0 %v561
    %587 = vmatpush.msra.mxu0 %v560
    %588 = vmatmul.f32.gmra.mxu0 %v570
    %v589 = vpop.f32.mrf.mxu0
    %v590 = vadd.f32 %v566, %v589
    %591 = vdwg.mxu0
    %v592 = vmul.f32 %v590, %v590
    %v593 = vmul.f32 %v590, %v592
    %v594 = vmul.f32 %v593, 0.044715
    %v595 = vadd.f32 %v590, %v594
    %v596 = vmul.f32 %v595, 0.7978846
    %v597 = vtanh.pop %v596
    %v598 = vadd.f32 %v597, 1.0
    %v599 = vmul.f32 %v598, 0.5
    %v600 = vmul.f32 %v590, %v599
    %v601 = vld [vmem:[%s5] sm:$0xff]
    %v602 = vld [vmem:[%s5 + $0x8] sm:$0xff]
    %v603 = vld [vmem:[%s5 + $0x10] sm:$0xff]
    %v604 = vld [vmem:[%s5 + $0x18] sm:$0xff]
    %v605 = vld [vmem:[%s6] sm:$0x1]
    %v607 = vperm.slane %v605, 0
    %v610 = vsel %vm568, %v600, 0
    %612 = vmatpush.msra.mxu0 0.0
    %613 = vmatpush.msra.mxu0 0.0
    %614 = vmatpush.msra.mxu0 0.0
    %615 = vmatpush.msra.mxu0 0.0
    %616 = vmatpush.msra.mxu0 0.0
    %617 = vmatpush.msra.mxu0 0.0
    %618 = vmatpush.msra.mxu0 0.0
    %619 = vmatpush.msra.mxu0 0.0
    %620 = vmatpush.msra.mxu0 0.0
    %621 = vmatpush.msra.mxu0 0.0
    %622 = vmatpush.msra.mxu0 0.0
    %623 = vmatpush.msra.mxu0 0.0
    %624 = vmatpush.msra.mxu0 %v604
    %625 = vmatpush.msra.mxu0 %v603
    %626 = vmatpush.msra.mxu0 %v602
    %627 = vmatpush.msra.mxu0 %v601
    %628 = vmatmul.f32.gmra.mxu0 %v610
    %v629 = vpop.f32.mrf.mxu0
    %v630 = vadd.f32 %v607, %v629
    %631 = vdwg.mxu0
    %v632 = vadd.f32 %v630, %v590
    %v633 = vld [vmem:[%s7] sm:$0x1]
    %v634 = vld [vmem:[%s8] sm:$0x1]
    %v635 = vsel %vm568, %v632, 0.0
    %636 = vadd.xlane.f32.xlu0 %v635
    %v637 = vpop.xlane.xlu0 %636
    %v638 = vrcp.pop 32.0
    %v639 = vmul.f32 32.0, %v638
    %v640 = vsub.f32 1.0, %v639
    %v641 = vmul.f32 %v638, %v640
    %v642 = vadd.f32 %v638, %v641
    %vm643 = vweird.f32 %v638
    %v644 = vsel %vm643, %v638, %v642
    %v645 = vmul.f32 %v637, %v644
    %v646 = vsub.f32 %v632, %v645
    %v647 = vmul.f32 %v646, %v646
    %v648 = vsel %vm568, %v647, 0.0
    %649 = vadd.xlane.f32.xlu0 %v648
    %v650 = vpop.xlane.xlu0 %649
    %v651 = vmul.f32 %v650, %v644
    %v652 = vadd.f32 %v651, 1e-05
    %v653 = vrsqrt.pop %v652
    %v654 = vmul.f32 %v653, %v652
    %v655 = vmul.f32 %v654, %v653
    %v656 = vmul.f32 0.5, %v655
    %v657 = vsub.f32 1.5, %v656
    %v658 = vmul.f32 %v653, %v657
    %vm659 = vweird.f32 %v652
    %vm660 = vweird.f32 %v653
    %vm661 = vmor %vm659, %vm660
    %v662 = vsel %vm661, %v653, %v658
    %v663 = vmul.f32 %v646, %v662
    %v665 = vperm.slane %v633, 0
    %v667 = vmul.f32 %v663, %v665
    %v669 = vperm.slane %v634, 0
    %v671 = vadd.f32 %v667, %v669
    %v672 = vld [vmem:[%s9] sm:$0xff]
    %v673 = vld [vmem:[%s9 + $0x8] sm:$0xff]
    %v674 = vld [vmem:[%s10] sm:$0xff]
    %v675 = vld [vmem:[%s10 + $0x8] sm:$0xff]
    %v676 = vld [vmem:[%s11] sm:$0xff]
    %v677 = vld [vmem:[%s11 + $0x8] sm:$0xff]
    %v678 = vld [vmem:[%s11 + $0x10] sm:$0xff]
    %v679 = vld [vmem:[%s11 + $0x18] sm:$0xff]
    %v680 = vld [vmem:[%s12] sm:$0x1]
    %v682 = vperm.slane %v680, 0
    %v685 = vsel %vm568, %v672, 0
    %v688 = vsel %vm568, %v673, 0
    %690 = vmatpush.msra.mxu0 0.0
    %691 = vmatpush.msra.mxu0 0.0
    %692 = vmatpush.msra.mxu0 0.0
    %693 = vmatpush.msra.mxu0 0.0
    %694 = vmatpush.msra.mxu0 0.0
    %695 = vmatpush.msra.mxu0 0.0
    %696 = vmatpush.msra.mxu0 0.0
    %697 = vmatpush.msra.mxu0 0.0
    %698 = vmatpush.msra.mxu0 0.0
    %699 = vmatpush.msra.mxu0 0.0
    %700 = vmatpush.msra.mxu0 0.0
    %701 = vmatpush.msra.mxu0 0.0
    %702 = vmatpush.msra.mxu0 %v679
    %703 = vmatpush.msra.mxu0 %v678
    %704 = vmatpush.msra.mxu0 %v677
    %705 = vmatpush.msra.mxu0 %v676
    %706 = vmatmul.f32.gmra.mxu0 %v685
    %v707 = vpop.f32.mrf.mxu0
    %v708 = vadd.f32 %v682, %v707
    %709 = vmatmul.f32.gmra.mxu0 %v688
    %v710 = vpop.f32.mrf.mxu0
    %v711 = vadd.f32 %v682, %v710
    %712 = vdwg.mxu0
    %v713 = vld [vmem:[%s13] sm:$0xff]
    %v714 = vld [vmem:[%s13 + $0x8] sm:$0xff]
    %v715 = vld [vmem:[%s13 + $0x10] sm:$0xff]
    %v716 = vld [vmem:[%s13 + $0x18] sm:$0xff]
    %v717 = vld [vmem:[%s13 + $0x20] sm:$0xff]
    %v718 = vld [vmem:[%s13 + $0x28] sm:$0xff]
    %v719 = vld [vmem:[%s13 + $0x30] sm:$0xff]
    %v720 = vld [vmem:[%s13 + $0x38] sm:$0xff]
    %v721 = vld [vmem:[%s14] sm:$0x1]
    %v723 = vperm.slane %v721, 0
    %vm725 = vcmask 523264
    %v727 = vsel %vm725, %v708, 0
    %v730 = vsel %vm725, %v711, 0
    %732 = vmatpush.msra.mxu0 0.0
    %733 = vmatpush.msra.mxu0 0.0
    %734 = vmatpush.msra.mxu0 0.0
    %735 = vmatpush.msra.mxu0 0.0
    %736 = vmatpush.msra.mxu0 0.0
    %737 = vmatpush.msra.mxu0 0.0
    %738 = vmatpush.msra.mxu0 0.0
    %739 = vmatpush.msra.mxu0 0.0
    %740 = vmatpush.msra.mxu0 %v720
    %741 = vmatpush.msra.mxu0 %v719
    %742 = vmatpush.msra.mxu0 %v718
    %743 = vmatpush.msra.mxu0 %v717
    %744 = vmatpush.msra.mxu0 %v716
    %745 = vmatpush.msra.mxu0 %v715
    %746 = vmatpush.msra.mxu0 %v714
    %747 = vmatpush.msra.mxu0 %v713
    %748 = vmatmul.f32.gmra.mxu0 %v727
    %v749 = vpop.f32.mrf.mxu0
    %v750 = vadd.f32 %v723, %v749
    %751 = vmatmul.f32.gmra.mxu0 %v730
    %v752 = vpop.f32.mrf.mxu0
    %v753 = vadd.f32 %v723, %v752
    %754 = vdwg.mxu0
    %vm755 = vcmask 130048
    %v757 = vsel %vm755, %v674, 0
    %v760 = vsel %vm755, %v675, 0
    %762 = vmatpush.msra.mxu0 0.0
    %763 = vmatpush.msra.mxu0 0.0
    %764 = vmatpush.msra.mxu0 0.0
    %765 = vmatpush.msra.mxu0 0.0
    %766 = vmatpush.msra.mxu0 0.0
    %767 = vmatpush.msra.mxu0 0.0
    %768 = vmatpush.msra.mxu0 0.0
    %769 = vmatpush.msra.mxu0 0.0
    %770 = vmatpush.msra.mxu0 0.0
    %771 = vmatpush.msra.mxu0 0.0
    %772 = vmatpush.msra.mxu0 0.0
    %773 = vmatpush.msra.mxu0 0.0
    %774 = vmatpush.msra.mxu0 0.0
    %775 = vmatpush.msra.mxu0 0.0
    %776 = vmatpush.msra.mxu0 %v753
    %777 = vmatpush.msra.mxu0 %v750
    %778 = vmatmul.f32.gmra.mxu0 %v757
    %v779 = vpop.f32.mrf.mxu0
    %v780 = vadd.f32 0.0, %v779
    %781 = vmatmul.f32.gmra.mxu0 %v760
    %v782 = vpop.f32.mrf.mxu0
    %v783 = vadd.f32 0.0, %v782
    %784 = vdwg.mxu0
    %v785 = vmax.f32 %v780, 0.0
    %v786 = vmax.f32 %v783, 0.0
    %v787 = vld [vmem:[%s15] sm:$0xff]
    %v788 = vld [vmem:[%s15 + $0x8] sm:$0xff]
    %v789 = vld [vmem:[%s15 + $0x10] sm:$0xff]
    %v790 = vld [vmem:[%s15 + $0x18] sm:$0xff]
    %v791 = vld [vmem:[%s15 + $0x20] sm:$0xff]
    %v792 = vld [vmem:[%s15 + $0x28] sm:$0xff]
    %v793 = vld [vmem:[%s15 + $0x30] sm:$0xff]
    %v794 = vld [vmem:[%s15 + $0x38] sm:$0xff]
    %v795 = vld [vmem:[%s16] sm:$0x1]
    %v797 = vperm.slane %v795, 0
    %v800 = vsel %vm725, %v785, 0
    %v803 = vsel %vm725, %v786, 0
    %805 = vmatpush.msra.mxu0 0.0
    %806 = vmatpush.msra.mxu0 0.0
    %807 = vmatpush.msra.mxu0 0.0
    %808 = vmatpush.msra.mxu0 0.0
    %809 = vmatpush.msra.mxu0 0.0
    %810 = vmatpush.msra.mxu0 0.0
    %811 = vmatpush.msra.mxu0 0.0
    %812 = vmatpush.msra.mxu0 0.0
    %813 = vmatpush.msra.mxu0 %v794
    %814 = vmatpush.msra.mxu0 %v793
    %815 = vmatpush.msra.mxu0 %v792
    %816 = vmatpush.msra.mxu0 %v791
    %817 = vmatpush.msra.mxu0 %v790
    %818 = vmatpush.msra.mxu0 %v789
    %819 = vmatpush.msra.mxu0 %v788
    %820 = vmatpush.msra.mxu0 %v787
    %821 = vmatmul.f32.gmra.mxu0 %v800
    %v822 = vpop.f32.mrf.mxu0
    %v823 = vadd.f32 %v797, %v822
    %824 = vmatmul.f32.gmra.mxu0 %v803
    %v825 = vpop.f32.mrf.mxu0
    %v826 = vadd.f32 %v797, %v825
    %827 = vdwg.mxu0
    %828 = vmatpush.msra.mxu0 0.0
    %829 = vmatpush.msra.mxu0 0.0
    %830 = vmatpush.msra.mxu0 0.0
    %831 = vmatpush.msra.mxu0 0.0
    %832 = vmatpush.msra.mxu0 0.0
    %833 = vmatpush.msra.mxu0 0.0
    %834 = vmatpush.msra.mxu0 0.0
    %835 = vmatpush.msra.mxu0 0.0
    %836 = vmatpush.msra.mxu0 0.0
    %837 = vmatpush.msra.mxu0 0.0
    %838 = vmatpush.msra.mxu0 0.0
    %839 = vmatpush.msra.mxu0 0.0
    %840 = vmatpush.msra.mxu0 0.0
    %841 = vmatpush.msra.mxu0 0.0
    %842 = vmatpush.msra.mxu0 %v826
    %843 = vmatpush.msra.mxu0 %v823
    %844 = vmatmul.f32.gmra.mxu0 %v757
    %v845 = vpop.f32.mrf.mxu0
    %v846 = vadd.f32 0.0, %v845
    %847 = vmatmul.f32.gmra.mxu0 %v760
    %v848 = vpop.f32.mrf.mxu0
    %v849 = vadd.f32 0.0, %v848
    %850 = vdwg.mxu0
    %851 = vst.msk [vmem:[#allocation4] sm:$0xff] %vm568, %v846
    %852 = vst.msk [vmem:[#allocation4 + $0x8] sm:$0xff] %vm568, %v849
    %855 = vrot.lane.b32.xlu0 %v846, 96
    %v856 = vpop.permute.xlu0 %855
    %857 = vrot.lane.b32.xlu0 %v849, 96
    %v858 = vpop.permute.xlu0 %857
    %861 = vst.msk [vmem:[#allocation6] sm:$0xff] %vm568, %v856
    %862 = vst.msk [vmem:[#allocation6 + $0x8] sm:$0xff] %vm568, %v858
    %v863 = vld [vmem:[%s17] sm:$0xff]
    %v864 = vld [vmem:[%s17 + $0x8] sm:$0xff]
    %v865 = vld [vmem:[%s17 + $0x10] sm:$0xff]
    %v866 = vld [vmem:[%s17 + $0x18] sm:$0xff]
    %v867 = vld [vmem:[%s17 + $0x20] sm:$0xff]
    %v868 = vld [vmem:[%s17 + $0x28] sm:$0xff]
    %v869 = vld [vmem:[%s17 + $0x30] sm:$0xff]
    %v870 = vld [vmem:[%s17 + $0x38] sm:$0xff]
    %v871 = vld [vmem:[%s18] sm:$0x1]
    %v873 = vperm.slane %v871, 0
    %v875 = vsel %vm725, %v846, 0
    %v877 = vsel %vm725, %v849, 0
    %879 = vmatpush.msra.mxu0 0.0
    %880 = vmatpush.msra.mxu0 0.0
    %881 = vmatpush.msra.mxu0 0.0
    %882 = vmatpush.msra.mxu0 0.0
    %883 = vmatpush.msra.mxu0 0.0
    %884 = vmatpush.msra.mxu0 0.0
    %885 = vmatpush.msra.mxu0 0.0
    %886 = vmatpush.msra.mxu0 0.0
    %887 = vmatpush.msra.mxu0 %v870
    %888 = vmatpush.msra.mxu0 %v869
    %889 = vmatpush.msra.mxu0 %v868
    %890 = vmatpush.msra.mxu0 %v867
    %891 = vmatpush.msra.mxu0 %v866
    %892 = vmatpush.msra.mxu0 %v865
    %893 = vmatpush.msra.mxu0 %v864
    %894 = vmatpush.msra.mxu0 %v863
    %895 = vmatmul.f32.gmra.mxu0 %v875
    %v896 = vpop.f32.mrf.mxu0
    %v897 = vadd.f32 %v873, %v896
    %898 = vmatmul.f32.gmra.mxu0 %v877
    %v899 = vpop.f32.mrf.mxu0
    %v900 = vadd.f32 %v873, %v899
    %901 = vdwg.mxu0
    %v902 = vmul.f32 %v897, %v897
    %v903 = vmul.f32 %v900, %v900
    %v904 = vmul.f32 %v897, %v902
    %v905 = vmul.f32 %v900, %v903
    %v906 = vmul.f32 %v904, 0.044715
    %v907 = vmul.f32 %v905, 0.044715
    %v908 = vadd.f32 %v897, %v906
    %v909 = vadd.f32 %v900, %v907
    %v910 = vmul.f32 %v908, 0.7978846
    %v911 = vmul.f32 %v909, 0.7978846
    %v912 = vtanh.pop %v910
    %v913 = vtanh.pop %v911
    %v914 = vadd.f32 %v912, 1.0
    %v915 = vadd.f32 %v913, 1.0
    %v916 = vmul.f32 %v914, 0.5
    %v917 = vmul.f32 %v915, 0.5
    %v918 = vmul.f32 %v897, %v916
    %v919 = vmul.f32 %v900, %v917
    %v920 = vld [vmem:[%s19] sm:$0xff]
    %v921 = vld [vmem:[%s19 + $0x8] sm:$0xff]
    %v922 = vld [vmem:[%s19 + $0x10] sm:$0xff]
    %v923 = vld [vmem:[%s19 + $0x18] sm:$0xff]
    %v924 = vld [vmem:[%s19 + $0x20] sm:$0xff]
    %v925 = vld [vmem:[%s19 + $0x28] sm:$0xff]
    %v926 = vld [vmem:[%s19 + $0x30] sm:$0xff]
    %v927 = vld [vmem:[%s19 + $0x38] sm:$0xff]
    %v928 = vld [vmem:[%s20] sm:$0x1]
    %v930 = vperm.slane %v928, 0
    %v933 = vsel %vm725, %v918, 0
    %v936 = vsel %vm725, %v919, 0
    %938 = vmatpush.msra.mxu0 0.0
    %939 = vmatpush.msra.mxu0 0.0
    %940 = vmatpush.msra.mxu0 0.0
    %941 = vmatpush.msra.mxu0 0.0
    %942 = vmatpush.msra.mxu0 0.0
    %943 = vmatpush.msra.mxu0 0.0
    %944 = vmatpush.msra.mxu0 0.0
    %945 = vmatpush.msra.mxu0 0.0
    %946 = vmatpush.msra.mxu0 %v927
    %947 = vmatpush.msra.mxu0 %v926
    %948 = vmatpush.msra.mxu0 %v925
    %949 = vmatpush.msra.mxu0 %v924
    %950 = vmatpush.msra.mxu0 %v923
    %951 = vmatpush.msra.mxu0 %v922
    %952 = vmatpush.msra.mxu0 %v921
    %953 = vmatpush.msra.mxu0 %v920
    %954 = vmatmul.f32.gmra.mxu0 %v933
    %v955 = vpop.f32.mrf.mxu0
    %v956 = vadd.f32 %v930, %v955
    %957 = vmatmul.f32.gmra.mxu0 %v936
    %v958 = vpop.f32.mrf.mxu0
    %v959 = vadd.f32 %v930, %v958
    %960 = vdwg.mxu0
    %v961 = vadd.f32 %v956, %v897
    %v962 = vadd.f32 %v959, %v900
    %v963 = vld [vmem:[%s21] sm:$0x1]
    %v964 = vld [vmem:[%s22] sm:$0x1]
    %v965 = vsel %vm568, %v961, 0.0
    %966 = vadd.xlane.f32.xlu0 %v965
    %v967 = vpop.xlane.xlu0 %966
    %v968 = vsel %vm568, %v962, 0.0
    %969 = vadd.xlane.f32.xlu0 %v968
    %v970 = vpop.xlane.xlu0 %969
    %v971 = vmul.f32 %v967, %v644
    %v972 = vmul.f32 %v970, %v644
    %v973 = vsub.f32 %v961, %v971
    %v974 = vsub.f32 %v962, %v972
    %v975 = vmul.f32 %v973, %v973
    %v976 = vmul.f32 %v974, %v974
    %v977 = vsel %vm568, %v975, 0.0
    %978 = vadd.xlane.f32.xlu0 %v977
    %v979 = vpop.xlane.xlu0 %978
    %v980 = vsel %vm568, %v976, 0.0
    %981 = vadd.xlane.f32.xlu0 %v980
    %v982 = vpop.xlane.xlu0 %981
    %v983 = vmul.f32 %v979, %v644
    %v984 = vmul.f32 %v982, %v644
    %v985 = vadd.f32 %v983, 1e-05
    %v986 = vadd.f32 %v984, 1e-05
    %v987 = vrsqrt.pop %v985
    %v988 = vmul.f32 %v987, %v985
    %v989 = vmul.f32 %v988, %v987
    %v990 = vmul.f32 0.5, %v989
    %v991 = vsub.f32 1.5, %v990
    %v992 = vmul.f32 %v987, %v991
    %vm993 = vweird.f32 %v985
    %vm994 = vweird.f32 %v987
    %vm995 = vmor %vm993, %vm994
    %v996 = vsel %vm995, %v987, %v992
    %v997 = vrsqrt.pop %v986
    %v998 = vmul.f32 %v997, %v986
    %v999 = vmul.f32 %v998, %v997
    %v1000 = vmul.f32 0.5, %v999
    %v1001 = vsub.f32 1.5, %v1000
    %v1002 = vmul.f32 %v997, %v1001
    %vm1003 = vweird.f32 %v986
    %vm1004 = vweird.f32 %v997
    %vm1005 = vmor %vm1003, %vm1004
    %v1006 = vsel %vm1005, %v997, %v1002
    %v1007 = vmul.f32 %v973, %v996
    %v1008 = vmul.f32 %v974, %v1006
    %v1010 = vperm.slane %v963, 0
    %v1012 = vmul.f32 %v1007, %v1010
    %v1013 = vmul.f32 %v1008, %v1010
    %v1015 = vperm.slane %v964, 0
    %v1017 = vadd.f32 %v1012, %v1015
    %v1018 = vadd.f32 %v1013, %v1015
    %1021 = vrot.lane.b32.xlu0 %v961, 96
    %v1022 = vpop.permute.xlu0 %1021
    %1023 = vrot.lane.b32.xlu0 %v962, 96
    %v1024 = vpop.permute.xlu0 %1023
    %v1027 = vsel %vm568, %v1022, 0.0
    %1028 = vadd.xlane.f32.xlu0 %v1027
    %v1029 = vpop.xlane.xlu0 %1028
    %v1030 = vsel %vm568, %v1024, 0.0
    %1031 = vadd.xlane.f32.xlu0 %v1030
    %v1032 = vpop.xlane.xlu0 %1031
    %v1033 = vmul.f32 %v1029, %v644
    %v1034 = vmul.f32 %v1032, %v644
    %v1035 = vsub.f32 %v961, %v1033
    %v1036 = vsub.f32 %v962, %v1034
    %v1037 = vmul.f32 %v1035, %v1035
    %v1038 = vmul.f32 %v1036, %v1036
    %1041 = vrot.lane.b32.xlu0 %v1037, 96
    %v1042 = vpop.permute.xlu0 %1041
    %1043 = vrot.lane.b32.xlu0 %v1038, 96
    %v1044 = vpop.permute.xlu0 %1043
    %v1047 = vsel %vm568, %v1042, 0.0
    %1048 = vadd.xlane.f32.xlu0 %v1047
    %v1049 = vpop.xlane.xlu0 %1048
    %v1050 = vsel %vm568, %v1044, 0.0
    %1051 = vadd.xlane.f32.xlu0 %v1050
    %v1052 = vpop.xlane.xlu0 %1051
    %v1053 = vmul.f32 %v1049, %v644
    %v1054 = vmul.f32 %v1052, %v644
    %v1055 = vadd.f32 %v1053, 1e-05
    %v1056 = vadd.f32 %v1054, 1e-05
    %v1057 = vrsqrt.pop %v1055
    %v1058 = vmul.f32 %v1057, %v1055
    %v1059 = vmul.f32 %v1058, %v1057
    %v1060 = vmul.f32 0.5, %v1059
    %v1061 = vsub.f32 1.5, %v1060
    %v1062 = vmul.f32 %v1057, %v1061
    %vm1063 = vweird.f32 %v1055
    %vm1064 = vweird.f32 %v1057
    %vm1065 = vmor %vm1063, %vm1064
    %v1066 = vsel %vm1065, %v1057, %v1062
    %v1067 = vrsqrt.pop %v1056
    %v1068 = vmul.f32 %v1067, %v1056
    %v1069 = vmul.f32 %v1068, %v1067
    %v1070 = vmul.f32 0.5, %v1069
    %v1071 = vsub.f32 1.5, %v1070
    %v1072 = vmul.f32 %v1067, %v1071
    %vm1073 = vweird.f32 %v1056
    %vm1074 = vweird.f32 %v1067
    %vm1075 = vmor %vm1073, %vm1074
    %v1076 = vsel %vm1075, %v1067, %v1072
    %v1077 = vmul.f32 %v1035, %v1066
    %v1078 = vmul.f32 %v1036, %v1076
    %v1079 = vmul.f32 %v1077, %v1010
    %v1080 = vmul.f32 %v1078, %v1010
    %v1081 = vadd.f32 %v1079, %v1015
    %v1082 = vadd.f32 %v1080, %v1015
    %v1083 = vlaneseq
    %v1084 = vand.u32 %v1083, 127
    %v1085 = vld [vmem:[%s23] sm:$0xff]
    %1086 = vset.pattern.permute.xlu0 0
    %1087 = vperm.xlu0 %1086, %v1085
    %v1088 = vpop.permute.xlu0 %1087
    %vm1089 = vcmp.eq.s32.totalorder %v1084, %v1088
    %v1090 = vsel %vm1089, 1, 0
    %v1091 = vcvt.s32.f32 %v1090
    %v1093 = vsel %vm755, %v1091, 0
    %1095 = vmatpush.msra.mxu0 0.0
    %1096 = vmatpush.msra.mxu0 0.0
    %1097 = vmatpush.msra.mxu0 0.0
    %1098 = vmatpush.msra.mxu0 0.0
    %1099 = vmatpush.msra.mxu0 0.0
    %1100 = vmatpush.msra.mxu0 0.0
    %1101 = vmatpush.msra.mxu0 0.0
    %1102 = vmatpush.msra.mxu0 0.0
    %1103 = vmatpush.msra.mxu0 0.0
    %1104 = vmatpush.msra.mxu0 0.0
    %1105 = vmatpush.msra.mxu0 0.0
    %1106 = vmatpush.msra.mxu0 0.0
    %1107 = vmatpush.msra.mxu0 0.0
    %1108 = vmatpush.msra.mxu0 0.0
    %1109 = vmatpush.msra.mxu0 %v1018
    %1110 = vmatpush.msra.mxu0 %v1017
    %1111 = vmatmul.f32.gmra.mxu0 %v1093
    %v1112 = vpop.f32.mrf.mxu0
    %v1113 = vadd.f32 0.0, %v1112
    %1114 = vdwg.mxu0
    %1117 = vrot.lane.b32.xlu0 %v1081, 96
    %v1118 = vpop.permute.xlu0 %1117
    %1119 = vrot.lane.b32.xlu0 %v1082, 96
    %v1120 = vpop.permute.xlu0 %1119
    %1123 = vmatpush.msra.mxu0 0.0
    %1124 = vmatpush.msra.mxu0 0.0
    %1125 = vmatpush.msra.mxu0 0.0
    %1126 = vmatpush.msra.mxu0 0.0
    %1127 = vmatpush.msra.mxu0 0.0
    %1128 = vmatpush.msra.mxu0 0.0
    %1129 = vmatpush.msra.mxu0 0.0
    %1130 = vmatpush.msra.mxu0 0.0
    %1131 = vmatpush.msra.mxu0 0.0
    %1132 = vmatpush.msra.mxu0 0.0
    %1133 = vmatpush.msra.mxu0 0.0
    %1134 = vmatpush.msra.mxu0 0.0
    %1135 = vmatpush.msra.mxu0 0.0
    %1136 = vmatpush.msra.mxu0 0.0
    %1137 = vmatpush.msra.mxu0 %v1120
    %1138 = vmatpush.msra.mxu0 %v1118
    %1139 = vmatmul.f32.gmra.mxu0 %v1093
    %v1140 = vpop.f32.mrf.mxu0
    %v1141 = vadd.f32 0.0, %v1140
    %1142 = vdwg.mxu0
    %v1144 = vsel %vm568, %v1113, 0
    %v1147 = vsel %vm568, %v671, 0
    %1149 = vmatpush.xpose.msra.mxu0 0.0
    %1150 = vmatpush.xpose.msra.mxu0 0.0
    %1151 = vmatpush.xpose.msra.mxu0 0.0
    %1152 = vmatpush.xpose.msra.mxu0 0.0
    %1153 = vmatpush.xpose.msra.mxu0 0.0
    %1154 = vmatpush.xpose.msra.mxu0 0.0
    %1155 = vmatpush.xpose.msra.mxu0 0.0
    %1156 = vmatpush.xpose.msra.mxu0 0.0
    %1157 = vmatpush.xpose.msra.mxu0 0.0
    %1158 = vmatpush.xpose.msra.mxu0 0.0
    %1159 = vmatpush.xpose.msra.mxu0 0.0
    %1160 = vmatpush.xpose.msra.mxu0 0.0
    %1161 = vmatpush.xpose.msra.mxu0 0.0
    %1162 = vmatpush.xpose.msra.mxu0 0.0
    %1163 = vmatpush.xpose.msra.mxu0 0.0
    %1164 = vmatpush.xpose.msra.mxu0 %v1147
    %1165 = vmatmul.f32.gmra.mxu0 %v1144
    %v1166 = vpop.f32.mrf.mxu0
    %v1167 = vadd.f32 0.0, %v1166
    %1168 = vdwg.mxu0
    %1169 = vmatpush.xpose.msra.mxu0 0.0
    %1170 = vmatpush.xpose.msra.mxu0 0.0
    %1171 = vmatpush.xpose.msra.mxu0 0.0
    %1172 = vmatpush.xpose.msra.mxu0 0.0
    %1173 = vmatpush.xpose.msra.mxu0 0.0
    %1174 = vmatpush.xpose.msra.mxu0 0.0
    %1175 = vmatpush.xpose.msra.mxu0 0.0
    %1176 = vmatpush.xpose.msra.mxu0 0.0
    %1177 = vmatpush.xpose.msra.mxu0 0.0
    %1178 = vmatpush.xpose.msra.mxu0 0.0
    %1179 = vmatpush.xpose.msra.mxu0 0.0
    %1180 = vmatpush.xpose.msra.mxu0 0.0
    %1181 = vmatpush.xpose.msra.mxu0 0.0
    %1182 = vmatpush.xpose.msra.mxu0 0.0
    %1183 = vmatpush.xpose.msra.mxu0 0.0
    %1184 = vmatpush.xpose.msra.mxu0 %v1147
    %1185 = vmatmul.f32.gmra.mxu0 %v1147
    %v1186 = vpop.f32.mrf.mxu0
    %v1187 = vadd.f32 0.0, %v1186
    %1188 = vdwg.mxu0
    %1189 = vmatpush.xpose.msra.mxu0 0.0
    %1190 = vmatpush.xpose.msra.mxu0 0.0
    %1191 = vmatpush.xpose.msra.mxu0 0.0
    %1192 = vmatpush.xpose.msra.mxu0 0.0
    %1193 = vmatpush.xpose.msra.mxu0 0.0
    %1194 = vmatpush.xpose.msra.mxu0 0.0
    %1195 = vmatpush.xpose.msra.mxu0 0.0
    %1196 = vmatpush.xpose.msra.mxu0 0.0
    %1197 = vmatpush.xpose.msra.mxu0 0.0
    %1198 = vmatpush.xpose.msra.mxu0 0.0
    %1199 = vmatpush.xpose.msra.mxu0 0.0
    %1200 = vmatpush.xpose.msra.mxu0 0.0
    %1201 = vmatpush.xpose.msra.mxu0 0.0
    %1202 = vmatpush.xpose.msra.mxu0 0.0
    %1203 = vmatpush.xpose.msra.mxu0 0.0
    %1204 = vmatpush.xpose.msra.mxu0 %v1144
    %1205 = vmatmul.f32.gmra.mxu0 %v1144
    %v1206 = vpop.f32.mrf.mxu0
    %v1207 = vadd.f32 %v1187, %v1206
    %1208 = vdwg.mxu0
    %v1209 = vmul.f32 %v1207, 0.5
    %vm1210 = vcmask 64512
    %v1211 = vsel %vm1210, %v1209, -inf
    %1212 = vmax.xlane.f32.xlu0 %v1211
    %v1213 = vpop.xlane.xlu0 %1212
    %v1214 = vsub.f32 %v1209, %v1213
    %v1215 = vmul.f32 %v1214, 1.442695
    %v1216 = vpow.pop %v1215
    %v1217 = vsel %vm1210, %v1216, 0.0
    %1218 = vadd.xlane.f32.xlu0 %v1217
    %v1219 = vpop.xlane.xlu0 %1218
    %v1220 = vrcp.pop %v1219
    %v1221 = vmul.f32 %v1216, %v1220
    %v1222 = vsel %vm1210, %v1167, -inf
    %1223 = vmax.xlane.f32.xlu0 %v1222
    %v1224 = vpop.xlane.xlu0 %1223
    %v1225 = vsub.f32 %v1167, %v1224
    %v1226 = vmul.f32 %v1225, 1.442695
    %v1227 = vpow.pop %v1226
    %v1228 = vsel %vm1210, %v1227, 0.0
    %1229 = vadd.xlane.f32.xlu0 %v1228
    %v1230 = vpop.xlane.xlu0 %1229
    %v1231 = vlog2.pop %v1230
    %v1232 = vmul.f32 %v1231, 0.6931472
    %v1233 = vsub.f32 %v1225, %v1232
    %v1234 = vrot.slane %v1222, 4
    %v1235 = vmax.f32 %v1222, %v1234
    %v1236 = vrot.slane %v1235, 2
    %v1237 = vmax.f32 %v1235, %v1236
    %v1238 = vrot.slane %v1237, 1
    %v1239 = vmax.f32 %v1237, %v1238
    %v1240 = vsub.f32 %v1167, %v1239
    %v1241 = vmul.f32 %v1240, 1.442695
    %v1242 = vpow.pop %v1241
    %v1243 = vsel %vm1210, %v1242, 0.0
    %v1244 = vrot.slane %v1243, 4
    %v1245 = vadd.f32 %v1243, %v1244
    %v1246 = vrot.slane %v1245, 2
    %v1247 = vadd.f32 %v1245, %v1246
    %v1248 = vrot.slane %v1247, 1
    %v1249 = vadd.f32 %v1247, %v1248
    %v1250 = vlog2.pop %v1249
    %v1251 = vmul.f32 %v1250, 0.6931472
    %v1252 = vsub.f32 %v1240, %v1251
    %v1253 = vsub.f32 0.0, %v1221
    %v1254 = vadd.f32 %v1233, %v1252
    %v1255 = vmul.f32 %v1253, %v1254
    %v1256 = vsel %vm1210, %v1255, 0.0
    %1257 = vadd.xlane.f32.xlu0 %v1256
    %v1258 = vpop.xlane.xlu0 %1257
    %v1259 = vrot.slane %v1258, 4
    %v1260 = vadd.f32 %v1258, %v1259
    %v1261 = vrot.slane %v1260, 2
    %v1262 = vadd.f32 %v1260, %v1261
    %v1263 = vrot.slane %v1262, 1
    %v1264 = vadd.f32 %v1262, %v1263
    %s1265 = vtos %v1264
    %v1266 = vstv %s1265
    %v1267 = vmul.f32 %v1266, 0.0625
    %v1269 = vsel %vm568, %v1141, 0
    %1271 = vmatpush.xpose.msra.mxu0 0.0
    %1272 = vmatpush.xpose.msra.mxu0 0.0
    %1273 = vmatpush.xpose.msra.mxu0 0.0
    %1274 = vmatpush.xpose.msra.mxu0 0.0
    %1275 = vmatpush.xpose.msra.mxu0 0.0
    %1276 = vmatpush.xpose.msra.mxu0 0.0
    %1277 = vmatpush.xpose.msra.mxu0 0.0
    %1278 = vmatpush.xpose.msra.mxu0 0.0
    %1279 = vmatpush.xpose.msra.mxu0 0.0
    %1280 = vmatpush.xpose.msra.mxu0 0.0
    %1281 = vmatpush.xpose.msra.mxu0 0.0
    %1282 = vmatpush.xpose.msra.mxu0 0.0
    %1283 = vmatpush.xpose.msra.mxu0 0.0
    %1284 = vmatpush.xpose.msra.mxu0 0.0
    %1285 = vmatpush.xpose.msra.mxu0 0.0
    %1286 = vmatpush.xpose.msra.mxu0 %v1144
    %1287 = vmatmul.f32.gmra.mxu0 %v1269
    %v1288 = vpop.f32.mrf.mxu0
    %v1289 = vadd.f32 0.0, %v1288
    %1290 = vdwg.mxu0
    %1291 = vmatpush.xpose.msra.mxu0 0.0
    %1292 = vmatpush.xpose.msra.mxu0 0.0
    %1293 = vmatpush.xpose.msra.mxu0 0.0
    %1294 = vmatpush.xpose.msra.mxu0 0.0
    %1295 = vmatpush.xpose.msra.mxu0 0.0
    %1296 = vmatpush.xpose.msra.mxu0 0.0
    %1297 = vmatpush.xpose.msra.mxu0 0.0
    %1298 = vmatpush.xpose.msra.mxu0 0.0
    %1299 = vmatpush.xpose.msra.mxu0 0.0
    %1300 = vmatpush.xpose.msra.mxu0 0.0
    %1301 = vmatpush.xpose.msra.mxu0 0.0
    %1302 = vmatpush.xpose.msra.mxu0 0.0
    %1303 = vmatpush.xpose.msra.mxu0 0.0
    %1304 = vmatpush.xpose.msra.mxu0 0.0
    %1305 = vmatpush.xpose.msra.mxu0 0.0
    %1306 = vmatpush.xpose.msra.mxu0 %v1144
    %1307 = vmatmul.f32.gmra.mxu0 %v1144
    %v1308 = vpop.f32.mrf.mxu0
    %v1309 = vadd.f32 0.0, %v1308
    %1310 = vdwg.mxu0
    %1311 = vmatpush.xpose.msra.mxu0 0.0
    %1312 = vmatpush.xpose.msra.mxu0 0.0
    %1313 = vmatpush.xpose.msra.mxu0 0.0
    %1314 = vmatpush.xpose.msra.mxu0 0.0
    %1315 = vmatpush.xpose.msra.mxu0 0.0
    %1316 = vmatpush.xpose.msra.mxu0 0.0
    %1317 = vmatpush.xpose.msra.mxu0 0.0
    %1318 = vmatpush.xpose.msra.mxu0 0.0
    %1319 = vmatpush.xpose.msra.mxu0 0.0
    %1320 = vmatpush.xpose.msra.mxu0 0.0
    %1321 = vmatpush.xpose.msra.mxu0 0.0
    %1322 = vmatpush.xpose.msra.mxu0 0.0
    %1323 = vmatpush.xpose.msra.mxu0 0.0
    %1324 = vmatpush.xpose.msra.mxu0 0.0
    %1325 = vmatpush.xpose.msra.mxu0 0.0
    %1326 = vmatpush.xpose.msra.mxu0 %v1269
    %1327 = vmatmul.f32.gmra.mxu0 %v1269
    %v1328 = vpop.f32.mrf.mxu0
    %v1329 = vadd.f32 %v1309, %v1328
    %1330 = vdwg.mxu0
    %v1331 = vmul.f32 %v1329, 0.5
    %v1332 = vsel %vm1210, %v1331, -inf
    %1333 = vmax.xlane.f32.xlu0 %v1332
    %v1334 = vpop.xlane.xlu0 %1333
    %v1335 = vsub.f32 %v1331, %v1334
    %v1336 = vmul.f32 %v1335, 1.442695
    %v1337 = vpow.pop %v1336
    %v1338 = vsel %vm1210, %v1337, 0.0
    %1339 = vadd.xlane.f32.xlu0 %v1338
    %v1340 = vpop.xlane.xlu0 %1339
    %v1341 = vrcp.pop %v1340
    %v1342 = vmul.f32 %v1337, %v1341
    %v1343 = vsel %vm1210, %v1289, -inf
    %1344 = vmax.xlane.f32.xlu0 %v1343
    %v1345 = vpop.xlane.xlu0 %1344
    %v1346 = vsub.f32 %v1289, %v1345
    %v1347 = vmul.f32 %v1346, 1.442695
    %v1348 = vpow.pop %v1347
    %v1349 = vsel %vm1210, %v1348, 0.0
    %1350 = vadd.xlane.f32.xlu0 %v1349
    %v1351 = vpop.xlane.xlu0 %1350
    %v1352 = vlog2.pop %v1351
    %v1353 = vmul.f32 %v1352, 0.6931472
    %v1354 = vsub.f32 %v1346, %v1353
    %v1355 = vrot.slane %v1343, 4
    %v1356 = vmax.f32 %v1343, %v1355
    %v1357 = vrot.slane %v1356, 2
    %v1358 = vmax.f32 %v1356, %v1357
    %v1359 = vrot.slane %v1358, 1
    %v1360 = vmax.f32 %v1358, %v1359
    %v1361 = vsub.f32 %v1289, %v1360
    %v1362 = vmul.f32 %v1361, 1.442695
    %v1363 = vpow.pop %v1362
    %v1364 = vsel %vm1210, %v1363, 0.0
    %v1365 = vrot.slane %v1364, 4
    %v1366 = vadd.f32 %v1364, %v1365
    %v1367 = vrot.slane %v1366, 2
    %v1368 = vadd.f32 %v1366, %v1367
    %v1369 = vrot.slane %v1368, 1
    %v1370 = vadd.f32 %v1368, %v1369
    %v1371 = vlog2.pop %v1370
    %v1372 = vmul.f32 %v1371, 0.6931472
    %v1373 = vsub.f32 %v1361, %v1372
    %v1374 = vsub.f32 0.0, %v1342
    %v1375 = vadd.f32 %v1354, %v1373
    %v1376 = vmul.f32 %v1374, %v1375
    %v1377 = vsel %vm1210, %v1376, 0.0
    %1378 = vadd.xlane.f32.xlu0 %v1377
    %v1379 = vpop.xlane.xlu0 %1378
    %v1380 = vrot.slane %v1379, 4
    %v1381 = vadd.f32 %v1379, %v1380
    %v1382 = vrot.slane %v1381, 2
    %v1383 = vadd.f32 %v1381, %v1382
    %v1384 = vrot.slane %v1383, 1
    %v1385 = vadd.f32 %v1383, %v1384
    %s1386 = vtos %v1385
    %v1387 = vstv %s1386
    %v1388 = vmul.f32 %v1387, 0.0625
    %v1389 = vadd.f32 %v1267, %v1388
    %vm1390 = vcmask 0
    %1391 = vst.msk [vmem:[#allocation2] sm:$0x1] %vm1390, %v1389
    // Predicated region
    $region98: #{tpu_custom_call.1} parent=1 // pred_check
      _
    $region99: #{tpu_custom_call.1} parent=1 // pred_check_branch
      %1393 = sbr.rel (0) target = $region101
    $region100: #{tpu_custom_call.1} parent=1 // pred_region
      %1395 = vsyncadd [#allocation3], 0
      %s1397 = sshll.u32 [#allocation2], 4
      %s1398 = int_to_ptr.vmem [resolvable:$true] %s1397
      %s1399 = sshll.u32 %s24, 4
      %s1400 = int_to_ptr.hbm [resolvable:$true] %s1399
      %1402 = dma.vmem_to_hbm [thread:$0]  %s1398, 16, %s1400, [#allocation3]
    $region101: #{tpu_custom_call.1} parent=1 // pred_fallthru
      _
    // Predicated region
    $region102: #{tpu_custom_call.1} parent=1 // pred_check
      _
    $region103: #{tpu_custom_call.1} parent=1 // pred_check_branch
      %1404 = sbr.rel (0) target = $region105
    $region104: #{tpu_custom_call.1} parent=1 // pred_region
      %1406 = vsyncadd [#allocation5], 0
      %s1407 = sshll.u32 [#allocation4], 4
      %s1408 = int_to_ptr.vmem [resolvable:$true] %s1407
      %s1409 = sshll.u32 %s25, 4
      %s1410 = int_to_ptr.hbm [resolvable:$true] %s1409
      %1415 = dma.vmem_to_hbm [thread:$0]  %s1408, 256, %s1410, [#allocation5], 128, 128, 8
    $region105: #{tpu_custom_call.1} parent=1 // pred_fallthru
      _
    // Predicated region
    $region106: #{tpu_custom_call.1} parent=1 // pred_check
      _
    $region107: #{tpu_custom_call.1} parent=1 // pred_check_branch
      %1417 = sbr.rel (0) target = $region109
    $region108: #{tpu_custom_call.1} parent=1 // pred_region
      %1419 = vsyncadd [#allocation5], 0
      %s1420 = sshll.u32 [#allocation6], 4
      %s1421 = int_to_ptr.vmem [resolvable:$true] %s1420
      %s1422 = sshll.u32 %s26, 4
      %s1423 = int_to_ptr.hbm [resolvable:$true] %s1422
      %1428 = dma.vmem_to_hbm [thread:$0]  %s1421, 256, %s1423, [#allocation5], 128, 128, 8
    $region109: #{tpu_custom_call.1} parent=1 // pred_fallthru
      _
    // Predicated region
    $region110: #{tpu_custom_call.1} parent=1 // pred_check
      _
    $region111: #{tpu_custom_call.1} parent=1 // pred_check_branch
      %1430 = sbr.rel (0) target = $region113
    $region112: #{tpu_custom_call.1} parent=1 // pred_region
      %1432 = dma.done [#allocation3], 16
    $region113: #{tpu_custom_call.1} parent=1 // pred_fallthru
      _
    // Predicated region
    $region114: #{tpu_custom_call.1} parent=1 // pred_check
      _
    $region115: #{tpu_custom_call.1} parent=1 // pred_check_branch
      %1434 = sbr.rel (0) target = $region117
    $region116: #{tpu_custom_call.1} parent=1 // pred_region
      %1436 = dma.done [#allocation5], 256
    $region117: #{tpu_custom_call.1} parent=1 // pred_fallthru
      _
    // Predicated region
    $region118: #{tpu_custom_call.1} parent=1 // pred_check
      _
    $region119: #{tpu_custom_call.1} parent=1 // pred_check_branch
      %1438 = sbr.rel (0) target = $region121
    $region120: #{tpu_custom_call.1} parent=1 // pred_region
      %1440 = dma.done [#allocation5], 256
    $region121: #{tpu_custom_call.1} parent=1 // pred_fallthru
      _
    %1441 = vsyncpa [#allocation3], 1
    %1442 = vsyncpa [#allocation5], 1

</llo_original>
